<compile_context>
chip_gen: v5e
topology: v5e:2x2
jax: 0.10.0
libtpu: 0.0.40
codegen_flags: <defaults>
</compile_context>

<pallas_src>
import math

import numpy as np

import jax
import jax.numpy as jnp
from jax.experimental import pallas as pl
from jax.experimental.pallas import tpu as pltpu

WIN_SIZE = 11
WIN_SIGMA = 1.5
NUM_SCALES = 4
NUM_ORIENT = 4
NUM_FILTERS = NUM_SCALES * NUM_ORIENT

_VMEM_LIMIT = 48 * 1024 * 1024          # safe on v7x (64 MiB) and v5e/v6e (128 MiB)


# ----------------------------------------------------------------------------
# Constant construction (Python / numpy so everything folds at trace time)
# ----------------------------------------------------------------------------
def _gaussian_taps(win_size, win_sigma):
    center = win_size // 2
    g = [math.exp(-((i - center) ** 2) / (2.0 * win_sigma ** 2))
         for i in range(win_size)]
    s = sum(g)
    return [v / s for v in g]


def _band_matrix(n, taps):
    # (band @ v)[i] = sum_k taps[k] * v[i + k - pad]  (zero-padded "same" x-corr)
    pad = len(taps) // 2
    m = np.zeros((n, n), dtype=np.float32)
    for k, t in enumerate(taps):
        off = k - pad
        i0, i1 = max(0, -off), min(n, n - off)
        if i1 > i0:
            idx = np.arange(i0, i1)
            m[idx, idx + off] = t
    return jnp.asarray(m)


def _log_gabor_filters(h, w):
    yv = jnp.linspace(-0.5, 0.5, h, dtype=jnp.float32)
    xv = jnp.linspace(-0.5, 0.5, w, dtype=jnp.float32)
    yy, xx = jnp.meshgrid(yv, xv, indexing="ij")
    radius = jnp.sqrt(xx ** 2 + yy ** 2)
    radius = jnp.fft.fftshift(radius)
    radius = radius.at[0, 0].set(1.0)
    filts = []
    for scale in range(NUM_SCALES):
        for orientation in range(NUM_ORIENT):
            theta = orientation * math.pi / NUM_ORIENT
            x_t = xx * math.cos(theta) + yy * math.sin(theta)
            y_t = -xx * math.sin(theta) + yy * math.cos(theta)
            lg = jnp.exp(-jnp.log(radius / (0.1 * 2 ** scale)) ** 2
                         / (2.0 * 0.55 ** 2))
            lg = lg * jnp.exp(-((x_t ** 2 + y_t ** 2) / (2.0 * 0.4 ** 2)))
            filts.append(lg)
    return jnp.stack(filts)                                  # (16, H, W)


# ----------------------------------------------------------------------------
# Pallas kernel 1: phase-congruency accumulation over the 16 log-Gabor
# responses.  Per-(filter,image) mean and 1/(std+1e-4) live in SMEM.
#   grid = (image {X,Y}: parallel, pixel tile: parallel, filter: arbitrary)
# ----------------------------------------------------------------------------
def _pc_accum_kernel(resp_ref, mean_ref, coef_ref, pc_ref):
    s = pl.program_id(0)                    # 0 == X, 1 == Y
    f = pl.program_id(2)                    # log-Gabor filter index
    m = mean_ref[f, s]                      # SMEM scalar
    cf = coef_ref[f, s]                     # SMEM scalar == 1/(std + 1e-4)
    term = jnp.maximum(resp_ref[0, 0] - m, 0.0) * cf

    @pl.when(f == 0)
    def _():                                # first filter writes directly
        pc_ref[0] = term

    @pl.when(f != 0)
    def _():
        pc_ref[0] = pc_ref[0] + term


def _phase_congruency_pair(X, Y):
    """Phase congruency of X and Y fused into one FFT pass + one Pallas call."""
    b, c, h, w = X.shape
    bc, hw = b * c, h * w

    xy = jnp.concatenate([X, Y], axis=0)                     # (2B, C, H, W)
    # TODO(synk): FFT/IFFT have no Pallas TPU primitive; spectral transform is plain JAX.
    fft = jnp.fft.fft2(xy)
    filts = _log_gabor_filters(h, w)                         # (16, H, W)
    resp = jnp.real(jnp.fft.ifft2(fft[None] * filts[:, None, None, :, :]))
    resp = resp.reshape(NUM_FILTERS, 2, bc, hw).astype(jnp.float32)

    # Single-pass global stats per (filter, image): sum + sum-of-squares,
    # Bessel-corrected variance (matches torch.mean / torch.std defaults).
    n = bc * hw
    s1 = jnp.sum(resp, axis=(2, 3))                          # (16, 2)
    s2 = jnp.sum(resp * resp, axis=(2, 3))                   # (16, 2)
    mean = (s1 / n).astype(jnp.float32)
    var = jnp.maximum((s2 - s1 * s1 / n) / max(n - 1, 1), 0.0)
    coef = (1.0 / (jnp.sqrt(var) + 1e-4)).astype(jnp.float32)

    # Pixel-axis tile: lane-dense, capped so a block stays <= ~4 MiB of VMEM.
    max_lanes = max(128, ((1 << 20) // max(bc, 1)) // 128 * 128)
    hw_tile = hw if hw <= max_lanes else max_lanes
    n_hw = pl.cdiv(hw, hw_tile)

    smem_spec = pl.BlockSpec(memory_space=pltpu.MemorySpace.SMEM)
    cost = pl.CostEstimate(
        flops=int(4 * NUM_FILTERS * 2 * bc * hw),
        transcendentals=0,
        bytes_accessed=int(4 * (NUM_FILTERS * 2 * bc * hw + 2 * bc * hw)),
    )
    pc = pl.pallas_call(
        _pc_accum_kernel,
        out_shape=jax.ShapeDtypeStruct((2, bc, hw), jnp.float32),
        grid_spec=pltpu.PrefetchScalarGridSpec(
            num_scalar_prefetch=0,
            grid=(2, n_hw, NUM_FILTERS),
            in_specs=[
                pl.BlockSpec((1, 1, bc, hw_tile), lambda s, t, f: (f, s, 0, t)),
                smem_spec,
                smem_spec,
            ],
            out_specs=pl.BlockSpec((1, bc, hw_tile), lambda s, t, f: (s, 0, t)),
        ),
        compiler_params=pltpu.CompilerParams(
            dimension_semantics=("parallel", "parallel", "arbitrary"),
            vmem_limit_bytes=_VMEM_LIMIT),
        cost_estimate=cost,
    )(resp, mean, coef)
    return pc                                                # (2, bc, H*W)


# ----------------------------------------------------------------------------
# Pallas kernel 2: fused FSIM math on a lane-dense (H, tb*W) block
# (tb planes packed side by side along the lane axis).
# ----------------------------------------------------------------------------
def _make_fsim_kernel(h, w, tb, pad, taps):
    tbw = tb * w
    wide = 5 * tbw                          # x, y, x*x, y*y, x*y side by side
    c1 = 0.01 ** 2
    c2 = 0.03 ** 2
    c3 = 0.03 ** 2

    def kernel(x_ref, y_ref, pcx_ref, pcy_ref, gh_ref, out_ref):
        f32 = jnp.float32
        x2 = x_ref[...]                     # (h, tbw)
        y2 = y_ref[...]
        pcx = pcx_ref[...]
        pcy = pcy_ref[...]

        # ---- W-direction 11-tap Gaussian blur: XLU lane rolls ----
        ops = jnp.concatenate([x2, y2, x2 * x2, y2 * y2, x2 * y2], axis=1)
        rc = taps[pad] * ops
        for k in range(len(taps)):
            if k == pad:
                continue
            # rc[., j] += g[k] * ops[., j + k - pad]
            rc = rc + taps[k] * pltpu.roll(ops, shift=(pad - k) % wide, axis=1)
        # Lane wrap only contaminates the first/last `pad` columns of each
        # plane; those columns are forced to S_sigma == 1 below (the reference
        # gaussian_filter produces exact zeros there), so no masks are needed.

        # ---- H-direction 11-tap Gaussian blur: one lane-dense MXU matmul ----
        lc = jnp.dot(gh_ref[...], rc, preferred_element_type=f32)   # (h, 5*tbw)

        mu1 = lc[:, 0 * tbw:1 * tbw]
        mu2 = lc[:, 1 * tbw:2 * tbw]
        sxx = lc[:, 2 * tbw:3 * tbw]
        syy = lc[:, 3 * tbw:4 * tbw]
        sxy = lc[:, 4 * tbw:5 * tbw]
        sigma1 = sxx - mu1 * mu1
        sigma2 = syy - mu2 * mu2
        sigma12 = sxy - mu1 * mu2
        # precise reciprocals: denominators can sit near the tiny constants
        s_sig = (2.0 * sigma12 + c3) * pl.reciprocal(sigma1 + sigma2 + c3)

        # In-plane column index of every lane.  The reference gaussian_filter
        # (1xK kernel with padding (K//2,0), then Kx1 with (0,K//2)) yields
        # exactly-zero blurred maps in the first/last K//2 columns, i.e.
        # S_sigma == 1 there; rows are zero-padded (matched by the band gh).
        col = jax.lax.broadcasted_iota(jnp.int32, (h, tbw), 1) % w
        gauss_ok = jnp.logical_and(col >= pad, col < (w - pad))
        s_sig = jnp.where(gauss_ok, s_sig, 1.0)

        # ---- Scharr gradient magnitude: lane rolls + sublane shifts ----
        not_last_c = (col != (w - 1)).astype(f32)
        not_first_c = (col != 0).astype(f32)
        zero_row = jnp.zeros((1, tbw), f32)

        def cp(z):   # z[i, j+1], zero past each plane's right edge
            return pltpu.roll(z, shift=tbw - 1, axis=1) * not_last_c

        def cm(z):   # z[i, j-1], zero past each plane's left edge
            return pltpu.roll(z, shift=1, axis=1) * not_first_c

        def rp(z):   # z[i+1, j], zero past the bottom image row
            return jnp.concatenate([z[1:, :], zero_row], axis=0)

        def rm(z):   # z[i-1, j], zero past the top image row
            return jnp.concatenate([zero_row, z[:-1, :]], axis=0)

        def grad_sq(z):                     # == gm**2 of the reference (incl. eps)
            dxc = cp(z) - cm(z)
            gx = 3.0 * rp(dxc) + 10.0 * dxc + 3.0 * rm(dxc)
            dyr = rp(z) - rm(z)
            gy = 3.0 * cp(dyr) + 10.0 * dyr + 3.0 * cm(dyr)
            return gx * gx + gy * gy + 1e-6

        ax = grad_sq(x2)
        ay = grad_sq(y2)
        s_gm = (2.0 * jnp.sqrt(ax * ay) + c2) * pl.reciprocal(ax + ay + c2)

        # ---- similarity maps + per-block partial reduction ----
        s_pc = (2.0 * pcx * pcy + c1) * pl.reciprocal(pcx * pcx + pcy * pcy + c1)
        pc_w = 0.5 * (pcx + pcy)
        t = s_pc * s_gm * s_sig * pc_w

        t_sum = jnp.sum(t)
        w_sum = jnp.sum(pc_w)
        # lane-dense (8,128) partial-sum tile per block -> grid axis stays parallel
        r8 = jax.lax.broadcasted_iota(jnp.int32, (8, 128), 0)
        c8 = jax.lax.broadcasted_iota(jnp.int32, (8, 128), 1)
        blk = (jnp.where((r8 == 0) & (c8 == 0), t_sum, 0.0)
               + jnp.where((r8 == 0) & (c8 == 1), w_sum, 0.0))
        out_ref[0] = blk.astype(f32)

    return kernel


def _pick_tb(bc, h, w, max_block_elems=1 << 18):
    """Planes per block.  Block last dim (tb*w) must be a multiple of 128 or
    the full lane extent (bc*w); prefer >=2 blocks so megacore can shard."""
    divisors = [d for d in range(1, bc + 1) if bc % d == 0]
    cands = [d for d in divisors if d == bc or (d * w) % 128 == 0]
    fitting = [d for d in cands if d * h * w <= max_block_elems]
    multi = [d for d in fitting if bc // d >= 2]
    if multi:
        return max(multi)
    if fitting:
        return max(fitting)
    return min(cands)


# ----------------------------------------------------------------------------
# Wrapper (forward pass of FSIMLoss)
# ----------------------------------------------------------------------------
def fsim_loss(X, Y, win_size=WIN_SIZE, win_sigma=WIN_SIGMA):
    if X.shape != Y.shape:
        raise ValueError(
            f"Input images should have the same dimensions, got {X.shape} / {Y.shape}")
    b, c, h, w = X.shape
    bc = b * c
    X = X.astype(jnp.float32)
    Y = Y.astype(jnp.float32)

    pc = _phase_congruency_pair(X, Y)                  # (2, bc, h*w)

    # Lane-dense layout: planes packed side-by-side along the lane axis.
    def to_lanes(img):
        return img.reshape(bc, h, w).transpose(1, 0, 2).reshape(h, bc * w)

    x_l, y_l = to_lanes(X), to_lanes(Y)
    pcx_l, pcy_l = to_lanes(pc[0]), to_lanes(pc[1])

    taps = _gaussian_taps(win_size, win_sigma)
    gh = _band_matrix(h, taps)                         # H-direction (left) operator
    pad = win_size // 2

    tb = _pick_tb(bc, h, w)
    nblk = bc // tb
    tbw = tb * w

    img_spec = pl.BlockSpec((h, tbw), lambda i: (0, i))
    gh_spec = pl.BlockSpec((h, h), lambda i: (0, 0))

    cost = pl.CostEstimate(
        flops=int(2 * 5 * bc * w * h * h + 22 * 5 * bc * h * w + 120 * bc * h * w),
        transcendentals=int(4 * bc * h * w),
        bytes_accessed=int(4 * (4 * bc * h * w + h * h + nblk * 8 * 128)),
    )
    partial = pl.pallas_call(
        _make_fsim_kernel(h, w, tb, pad, taps),
        out_shape=jax.ShapeDtypeStruct((nblk, 8, 128), jnp.float32),
        grid_spec=pltpu.PrefetchScalarGridSpec(
            num_scalar_prefetch=0,
            grid=(nblk,),
            in_specs=[img_spec, img_spec, img_spec, img_spec, gh_spec],
            out_specs=pl.BlockSpec((1, 8, 128), lambda i: (i, 0, 0)),
        ),
        compiler_params=pltpu.CompilerParams(
            dimension_semantics=("parallel",),
            vmem_limit_bytes=_VMEM_LIMIT),
        cost_estimate=cost,
    )(x_l, y_l, pcx_l, pcy_l, gh)

    sums = jnp.sum(partial, axis=0)[0]                 # (128,)
    fsim_score = sums[0] / (sums[1] + 1e-6)
    return 1.0 - fsim_score


if __name__ == "__main__":
    key = jax.random.PRNGKey(0)
    k1, k2 = jax.random.split(key)
    X = jax.random.uniform(k1, (2, 4, 16, 16), dtype=jnp.float32)
    Y = jax.random.uniform(k2, (2, 4, 16, 16), dtype=jnp.float32)
    loss = jax.jit(fsim_loss)(X, Y)
    jax.block_until_ready(loss)
    print("KERNEL_OK")
</pallas_src>

<mosaic_0001>
module attributes {stable_mosaic.version = 11 : i64} {
  func.func @_pc_accum_kernel(%arg0: i32, %arg1: i32, %arg2: i32, %arg3: memref<1x1x8x256xf32, #tpu.memory_space<vmem>>, %arg4: memref<16x2xf32, #tpu.memory_space<smem>>, %arg5: memref<16x2xf32, #tpu.memory_space<smem>>, %arg6: memref<1x8x256xf32, #tpu.memory_space<vmem>>) attributes {dimension_semantics = [#tpu.dimension_semantics<parallel>, #tpu.dimension_semantics<parallel>, #tpu.dimension_semantics<arbitrary>], iteration_bounds = array<i64: 2, 1, 16>, scalar_prefetch = 0 : i64, scratch_operands = 0 : i64, tpu.core_type = #tpu.core_type<tc>, window_params = [{transform_indices = @transform_0, window_bounds = array<i64: 1, 1, 8, 256>}, {transform_indices = @transform_1, window_bounds = array<i64: 16, 2>}, {transform_indices = @transform_2, window_bounds = array<i64: 16, 2>}, {transform_indices = @transform_3, window_bounds = array<i64: 1, 8, 256>}]} {
    %0 = arith.index_cast %arg2 : i32 to index
    %1 = arith.index_cast %arg0 : i32 to index
    %2 = memref.load %arg4[%0, %1] : memref<16x2xf32, #tpu.memory_space<smem>>
    %3 = arith.index_cast %arg2 : i32 to index
    %4 = arith.index_cast %arg0 : i32 to index
    %5 = memref.load %arg5[%3, %4] : memref<16x2xf32, #tpu.memory_space<smem>>
    %c0 = arith.constant 0 : index
    %c0_0 = arith.constant 0 : index
    %c0_1 = arith.constant 0 : index
    %c0_2 = arith.constant 0 : index
    %6 = vector.load %arg3[%c0, %c0_0, %c0_1, %c0_2] : memref<1x1x8x256xf32, #tpu.memory_space<vmem>>, vector<1x1x8x256xf32>
    %7 = vector.shape_cast %6 : vector<1x1x8x256xf32> to vector<8x256xf32>
    %8 = vector.broadcast %2 : f32 to vector<8x256xf32>
    %9 = arith.subf %7, %8 : vector<8x256xf32>
    %cst = arith.constant 0.000000e+00 : f32
    %10 = vector.broadcast %cst : f32 to vector<8x256xf32>
    %11 = arith.maximumf %9, %10 : vector<8x256xf32>
    %12 = vector.broadcast %5 : f32 to vector<8x256xf32>
    %13 = arith.mulf %11, %12 : vector<8x256xf32>
    %c0_i32 = arith.constant 0 : i32
    %14 = arith.cmpi eq, %arg2, %c0_i32 : i32
    %15 = arith.extui %14 : i1 to i32
    %c0_i32_3 = arith.constant 0 : i32
    %16 = arith.cmpi ne, %15, %c0_i32_3 : i32
    scf.if %16 {
      %c0_6 = arith.constant 0 : index
      %c0_7 = arith.constant 0 : index
      %c0_8 = arith.constant 0 : index
      %20 = vector.load %arg6[%c0_6, %c0_7, %c0_8] : memref<1x8x256xf32, #tpu.memory_space<vmem>>, vector<1x8x256xf32>
      %21 = vector.shape_cast %20 : vector<1x8x256xf32> to vector<8x256xf32>
      %22 = vector.shape_cast %13 : vector<8x256xf32> to vector<1x8x256xf32>
      tpu.vector_store %arg6[%c0_6, %c0_7, %c0_8], %22 {strides = array<i32>} : memref<1x8x256xf32, #tpu.memory_space<vmem>>, vector<1x8x256xf32>,
    } else {
    }
    %c0_i32_4 = arith.constant 0 : i32
    %17 = arith.cmpi ne, %arg2, %c0_i32_4 : i32
    %18 = arith.extui %17 : i1 to i32
    %c0_i32_5 = arith.constant 0 : i32
    %19 = arith.cmpi ne, %18, %c0_i32_5 : i32
    scf.if %19 {
      %c0_6 = arith.constant 0 : index
      %c0_7 = arith.constant 0 : index
      %c0_8 = arith.constant 0 : index
      %20 = vector.load %arg6[%c0_6, %c0_7, %c0_8] : memref<1x8x256xf32, #tpu.memory_space<vmem>>, vector<1x8x256xf32>
      %21 = vector.shape_cast %20 : vector<1x8x256xf32> to vector<8x256xf32>
      %22 = arith.addf %21, %13 : vector<8x256xf32>
      %c0_9 = arith.constant 0 : index
      %c0_10 = arith.constant 0 : index
      %c0_11 = arith.constant 0 : index
      %23 = vector.load %arg6[%c0_9, %c0_10, %c0_11] : memref<1x8x256xf32, #tpu.memory_space<vmem>>, vector<1x8x256xf32>
      %24 = vector.shape_cast %23 : vector<1x8x256xf32> to vector<8x256xf32>
      %25 = vector.shape_cast %22 : vector<8x256xf32> to vector<1x8x256xf32>
      tpu.vector_store %arg6[%c0_9, %c0_10, %c0_11], %25 {strides = array<i32>} : memref<1x8x256xf32, #tpu.memory_space<vmem>>, vector<1x8x256xf32>,
    } else {
    }
    return
  }
  func.func @transform_0(%arg0: i32, %arg1: i32, %arg2: i32) -> (i32, i32, i32, i32) {
    %c0_i32 = arith.constant 0 : i32
    %c0_i32_0 = arith.constant 0 : i32
    return %arg2, %arg0, %c0_i32, %arg1 : i32, i32, i32, i32
  }
  func.func @transform_1(%arg0: i32, %arg1: i32, %arg2: i32) -> (i32, i32) {
    %c0_i32 = arith.constant 0 : i32
    %c0_i32_0 = arith.constant 0 : i32
    %c0_i32_1 = arith.constant 0 : i32
    return %c0_i32, %c0_i32_0 : i32, i32
  }
  func.func @transform_2(%arg0: i32, %arg1: i32, %arg2: i32) -> (i32, i32) {
    %c0_i32 = arith.constant 0 : i32
    %c0_i32_0 = arith.constant 0 : i32
    %c0_i32_1 = arith.constant 0 : i32
    return %c0_i32, %c0_i32_0 : i32, i32
  }
  func.func @transform_3(%arg0: i32, %arg1: i32, %arg2: i32) -> (i32, i32, i32) {
    %c0_i32 = arith.constant 0 : i32
    %c0_i32_0 = arith.constant 0 : i32
    return %arg0, %c0_i32, %arg1 : i32, i32, i32
  }
}

module attributes {stable_mosaic.version = 11 : i64} {
  func.func @kernel(%arg0: i32, %arg1: memref<16x128xf32, #tpu.memory_space<vmem>>, %arg2: memref<16x128xf32, #tpu.memory_space<vmem>>, %arg3: memref<16x128xf32, #tpu.memory_space<vmem>>, %arg4: memref<16x128xf32, #tpu.memory_space<vmem>>, %arg5: memref<16x16xf32, #tpu.memory_space<vmem>>, %arg6: memref<1x8x128xf32, #tpu.memory_space<vmem>>) attributes {dimension_semantics = [#tpu.dimension_semantics<parallel>], iteration_bounds = array<i64: 1>, scalar_prefetch = 0 : i64, scratch_operands = 0 : i64, tpu.core_type = #tpu.core_type<tc>, window_params = [{transform_indices = @transform_0, window_bounds = array<i64: 16, 128>}, {transform_indices = @transform_1, window_bounds = array<i64: 16, 128>}, {transform_indices = @transform_2, window_bounds = array<i64: 16, 128>}, {transform_indices = @transform_3, window_bounds = array<i64: 16, 128>}, {pipeline_mode = #tpu.pipeline_mode<synchronous>, transform_indices = @transform_4, window_bounds = array<i64: 16, 16>}, {transform_indices = @transform_5, window_bounds = array<i64: 1, 8, 128>}]} {
    %c0 = arith.constant 0 : index
    %c0_0 = arith.constant 0 : index
    %0 = vector.load %arg1[%c0, %c0_0] : memref<16x128xf32, #tpu.memory_space<vmem>>, vector<16x128xf32>
    %c0_1 = arith.constant 0 : index
    %c0_2 = arith.constant 0 : index
    %1 = vector.load %arg2[%c0_1, %c0_2] : memref<16x128xf32, #tpu.memory_space<vmem>>, vector<16x128xf32>
    %c0_3 = arith.constant 0 : index
    %c0_4 = arith.constant 0 : index
    %2 = vector.load %arg3[%c0_3, %c0_4] : memref<16x128xf32, #tpu.memory_space<vmem>>, vector<16x128xf32>
    %c0_5 = arith.constant 0 : index
    %c0_6 = arith.constant 0 : index
    %3 = vector.load %arg4[%c0_5, %c0_6] : memref<16x128xf32, #tpu.memory_space<vmem>>, vector<16x128xf32>
    %4 = arith.mulf %0, %0 : vector<16x128xf32>
    %5 = arith.mulf %1, %1 : vector<16x128xf32>
    %6 = arith.mulf %0, %1 : vector<16x128xf32>
    %7 = tpu.concatenate %0, %1, %4, %5, %6 in 1 : vector<16x128xf32>, vector<16x128xf32>, vector<16x128xf32>, vector<16x128xf32>, vector<16x128xf32> -> vector<16x640xf32>
    %cst = arith.constant 0.266011715 : f32
    %8 = vector.broadcast %cst : f32 to vector<16x640xf32>
    %9 = arith.mulf %8, %7 : vector<16x640xf32>
    %c5_i32 = arith.constant 5 : i32
    %10 = tpu.dynamic_rotate %7 by %c5_i32 dim 1 : vector<16x640xf32>, i32 -> vector<16x640xf32>
    %cst_7 = arith.constant 0.00102838012 : f32
    %11 = vector.broadcast %cst_7 : f32 to vector<16x640xf32>
    %12 = arith.mulf %11, %10 : vector<16x640xf32>
    %13 = arith.addf %9, %12 : vector<16x640xf32>
    %c4_i32 = arith.constant 4 : i32
    %14 = tpu.dynamic_rotate %7 by %c4_i32 dim 1 : vector<16x640xf32>, i32 -> vector<16x640xf32>
    %cst_8 = arith.constant 0.00759875821 : f32
    %15 = vector.broadcast %cst_8 : f32 to vector<16x640xf32>
    %16 = arith.mulf %15, %14 : vector<16x640xf32>
    %17 = arith.addf %13, %16 : vector<16x640xf32>
    %c3_i32 = arith.constant 3 : i32
    %18 = tpu.dynamic_rotate %7 by %c3_i32 dim 1 : vector<16x640xf32>, i32 -> vector<16x640xf32>
    %cst_9 = arith.constant 0.0360007733 : f32
    %19 = vector.broadcast %cst_9 : f32 to vector<16x640xf32>
    %20 = arith.mulf %19, %18 : vector<16x640xf32>
    %21 = arith.addf %17, %20 : vector<16x640xf32>
    %c2_i32 = arith.constant 2 : i32
    %22 = tpu.dynamic_rotate %7 by %c2_i32 dim 1 : vector<16x640xf32>, i32 -> vector<16x640xf32>
    %cst_10 = arith.constant 0.109360687 : f32
    %23 = vector.broadcast %cst_10 : f32 to vector<16x640xf32>
    %24 = arith.mulf %23, %22 : vector<16x640xf32>
    %25 = arith.addf %21, %24 : vector<16x640xf32>
    %c1_i32 = arith.constant 1 : i32
    %26 = tpu.dynamic_rotate %7 by %c1_i32 dim 1 : vector<16x640xf32>, i32 -> vector<16x640xf32>
    %cst_11 = arith.constant 0.213005543 : f32
    %27 = vector.broadcast %cst_11 : f32 to vector<16x640xf32>
    %28 = arith.mulf %27, %26 : vector<16x640xf32>
    %29 = arith.addf %25, %28 : vector<16x640xf32>
    %c639_i32 = arith.constant 639 : i32
    %30 = tpu.dynamic_rotate %7 by %c639_i32 dim 1 : vector<16x640xf32>, i32 -> vector<16x640xf32>
    %cst_12 = arith.constant 0.213005543 : f32
    %31 = vector.broadcast %cst_12 : f32 to vector<16x640xf32>
    %32 = arith.mulf %31, %30 : vector<16x640xf32>
    %33 = arith.addf %29, %32 : vector<16x640xf32>
    %c638_i32 = arith.constant 638 : i32
    %34 = tpu.dynamic_rotate %7 by %c638_i32 dim 1 : vector<16x640xf32>, i32 -> vector<16x640xf32>
    %cst_13 = arith.constant 0.109360687 : f32
    %35 = vector.broadcast %cst_13 : f32 to vector<16x640xf32>
    %36 = arith.mulf %35, %34 : vector<16x640xf32>
    %37 = arith.addf %33, %36 : vector<16x640xf32>
    %c637_i32 = arith.constant 637 : i32
    %38 = tpu.dynamic_rotate %7 by %c637_i32 dim 1 : vector<16x640xf32>, i32 -> vector<16x640xf32>
    %cst_14 = arith.constant 0.0360007733 : f32
    %39 = vector.broadcast %cst_14 : f32 to vector<16x640xf32>
    %40 = arith.mulf %39, %38 : vector<16x640xf32>
    %41 = arith.addf %37, %40 : vector<16x640xf32>
    %c636_i32 = arith.constant 636 : i32
    %42 = tpu.dynamic_rotate %7 by %c636_i32 dim 1 : vector<16x640xf32>, i32 -> vector<16x640xf32>
    %cst_15 = arith.constant 0.00759875821 : f32
    %43 = vector.broadcast %cst_15 : f32 to vector<16x640xf32>
    %44 = arith.mulf %43, %42 : vector<16x640xf32>
    %45 = arith.addf %41, %44 : vector<16x640xf32>
    %c635_i32 = arith.constant 635 : i32
    %46 = tpu.dynamic_rotate %7 by %c635_i32 dim 1 : vector<16x640xf32>, i32 -> vector<16x640xf32>
    %cst_16 = arith.constant 0.00102838012 : f32
    %47 = vector.broadcast %cst_16 : f32 to vector<16x640xf32>
    %48 = arith.mulf %47, %46 : vector<16x640xf32>
    %49 = arith.addf %45, %48 : vector<16x640xf32>
    %c0_17 = arith.constant 0 : index
    %c0_18 = arith.constant 0 : index
    %50 = vector.load %arg5[%c0_17, %c0_18] : memref<16x16xf32, #tpu.memory_space<vmem>>, vector<16x16xf32>
    %cst_19 = arith.constant dense<0.000000e+00> : vector<16x640xf32>
    %51 = tpu.matmul %50, %49, %cst_19 {dimension_numbers = #tpu.dot_dimension_numbers<[1], [0], [0], [1], [0, 0, 1, 1], [], []>} : vector<16x16xf32>, vector<16x640xf32>, vector<16x640xf32> -> vector<16x640xf32>
    %52 = vector.extract_strided_slice %51 {offsets = [0, 0], sizes = [16, 128], strides = [1, 1]} : vector<16x640xf32> to vector<16x128xf32>
    %53 = vector.extract_strided_slice %51 {offsets = [0, 128], sizes = [16, 128], strides = [1, 1]} : vector<16x640xf32> to vector<16x128xf32>
    %54 = vector.extract_strided_slice %51 {offsets = [0, 256], sizes = [16, 128], strides = [1, 1]} : vector<16x640xf32> to vector<16x128xf32>
    %55 = vector.extract_strided_slice %51 {offsets = [0, 384], sizes = [16, 128], strides = [1, 1]} : vector<16x640xf32> to vector<16x128xf32>
    %56 = vector.extract_strided_slice %51 {offsets = [0, 512], sizes = [16, 128], strides = [1, 1]} : vector<16x640xf32> to vector<16x128xf32>
    %57 = arith.mulf %52, %52 : vector<16x128xf32>
    %58 = arith.subf %54, %57 : vector<16x128xf32>
    %59 = arith.mulf %53, %53 : vector<16x128xf32>
    %60 = arith.subf %55, %59 : vector<16x128xf32>
    %61 = arith.mulf %52, %53 : vector<16x128xf32>
    %62 = arith.subf %56, %61 : vector<16x128xf32>
    %cst_20 = arith.constant 2.000000e+00 : f32
    %63 = vector.broadcast %cst_20 : f32 to vector<16x128xf32>
    %64 = arith.mulf %63, %62 : vector<16x128xf32>
    %cst_21 = arith.constant 8.99999984E-4 : f32
    %65 = vector.broadcast %cst_21 : f32 to vector<16x128xf32>
    %66 = arith.addf %64, %65 : vector<16x128xf32>
    %67 = arith.addf %58, %60 : vector<16x128xf32>
    %cst_22 = arith.constant 8.99999984E-4 : f32
    %68 = vector.broadcast %cst_22 : f32 to vector<16x128xf32>
    %69 = arith.addf %67, %68 : vector<16x128xf32>
    %70 = tpu.reciprocal %69 : vector<16x128xf32> -> vector<16x128xf32>
    %71 = arith.mulf %66, %70 : vector<16x128xf32>
    %72 = tpu.iota {dimensions = array<i32: 1>} : vector<16x128xi32>
    %c16_i32 = arith.constant 16 : i32
    %c0_i32 = arith.constant 0 : i32
    %73 = arith.cmpi eq, %c16_i32, %c0_i32 : i32
    %c1_i32_23 = arith.constant 1 : i32
    %74 = arith.select %73, %c1_i32_23, %c16_i32 : i32
    %75 = vector.broadcast %74 : i32 to vector<16x128xi32>
    %76 = arith.remsi %72, %75 : vector<16x128xi32>
    %c0_i32_24 = arith.constant 0 : i32
    %77 = vector.broadcast %c0_i32_24 : i32 to vector<16x128xi32>
    %78 = arith.cmpi ne, %76, %77 : vector<16x128xi32>
    %c0_i32_25 = arith.constant 0 : i32
    %79 = vector.broadcast %c0_i32_25 : i32 to vector<16x128xi32>
    %80 = arith.cmpi slt, %76, %79 : vector<16x128xi32>
    %c0_i32_26 = arith.constant 0 : i32
    %81 = arith.cmpi slt, %74, %c0_i32_26 : i32
    %82 = vector.broadcast %81 : i1 to vector<16x128xi1>
    %83 = vector.broadcast %82 : vector<16x128xi1> to vector<16x128xi1>
    %84 = arith.xori %80, %83 : vector<16x128xi1>
    %85 = arith.andi %84, %78 : vector<16x128xi1>
    %86 = vector.broadcast %74 : i32 to vector<16x128xi32>
    %87 = arith.addi %76, %86 : vector<16x128xi32>
    %88 = arith.select %85, %87, %76 : vector<16x128xi1>, vector<16x128xi32>
    %c5_i32_27 = arith.constant 5 : i32
    %89 = vector.broadcast %c5_i32_27 : i32 to vector<16x128xi32>
    %90 = arith.cmpi sge, %88, %89 : vector<16x128xi32>
    %c11_i32 = arith.constant 11 : i32
    %91 = vector.broadcast %c11_i32 : i32 to vector<16x128xi32>
    %92 = arith.cmpi slt, %88, %91 : vector<16x128xi32>
    %93 = arith.andi %90, %92 : vector<16x128xi1>
    %cst_28 = arith.constant 1.000000e+00 : f32
    %94 = vector.broadcast %cst_28 : f32 to vector<16x128xf32>
    %95 = arith.select %93, %71, %94 : vector<16x128xi1>, vector<16x128xf32>
    %c15_i32 = arith.constant 15 : i32
    %96 = vector.broadcast %c15_i32 : i32 to vector<16x128xi32>
    %97 = arith.cmpi ne, %88, %96 : vector<16x128xi32>
    %98 = arith.extui %97 : vector<16x128xi1> to vector<16x128xi32>
    %99 = arith.sitofp %98 : vector<16x128xi32> to vector<16x128xf32>
    %c0_i32_29 = arith.constant 0 : i32
    %100 = vector.broadcast %c0_i32_29 : i32 to vector<16x128xi32>
    %101 = arith.cmpi ne, %88, %100 : vector<16x128xi32>
    %102 = arith.extui %101 : vector<16x128xi1> to vector<16x128xi32>
    %103 = arith.sitofp %102 : vector<16x128xi32> to vector<16x128xf32>
    %cst_30 = arith.constant 0.000000e+00 : f32
    %104 = vector.broadcast %cst_30 : f32 to vector<1x128xf32>
    %c127_i32 = arith.constant 127 : i32
    %105 = tpu.dynamic_rotate %0 by %c127_i32 dim 1 : vector<16x128xf32>, i32 -> vector<16x128xf32>
    %106 = arith.mulf %105, %99 : vector<16x128xf32>
    %c1_i32_31 = arith.constant 1 : i32
    %107 = tpu.dynamic_rotate %0 by %c1_i32_31 dim 1 : vector<16x128xf32>, i32 -> vector<16x128xf32>
    %108 = arith.mulf %107, %103 : vector<16x128xf32>
    %109 = arith.subf %106, %108 : vector<16x128xf32>
    %110 = vector.extract_strided_slice %109 {offsets = [1, 0], sizes = [15, 128], strides = [1, 1]} : vector<16x128xf32> to vector<15x128xf32>
    %111 = tpu.concatenate %110, %104 in 0 : vector<15x128xf32>, vector<1x128xf32> -> vector<16x128xf32>
    %cst_32 = arith.constant 3.000000e+00 : f32
    %112 = vector.broadcast %cst_32 : f32 to vector<16x128xf32>
    %113 = arith.mulf %112, %111 : vector<16x128xf32>
    %cst_33 = arith.constant 1.000000e+01 : f32
    %114 = vector.broadcast %cst_33 : f32 to vector<16x128xf32>
    %115 = arith.mulf %114, %109 : vector<16x128xf32>
    %116 = arith.addf %113, %115 : vector<16x128xf32>
    %117 = vector.extract_strided_slice %109 {offsets = [0, 0], sizes = [15, 128], strides = [1, 1]} : vector<16x128xf32> to vector<15x128xf32>
    %118 = tpu.concatenate %104, %117 in 0 : vector<1x128xf32>, vector<15x128xf32> -> vector<16x128xf32>
    %cst_34 = arith.constant 3.000000e+00 : f32
    %119 = vector.broadcast %cst_34 : f32 to vector<16x128xf32>
    %120 = arith.mulf %119, %118 : vector<16x128xf32>
    %121 = arith.addf %116, %120 : vector<16x128xf32>
    %122 = vector.extract_strided_slice %0 {offsets = [1, 0], sizes = [15, 128], strides = [1, 1]} : vector<16x128xf32> to vector<15x128xf32>
    %123 = tpu.concatenate %122, %104 in 0 : vector<15x128xf32>, vector<1x128xf32> -> vector<16x128xf32>
    %124 = vector.extract_strided_slice %0 {offsets = [0, 0], sizes = [15, 128], strides = [1, 1]} : vector<16x128xf32> to vector<15x128xf32>
    %125 = tpu.concatenate %104, %124 in 0 : vector<1x128xf32>, vector<15x128xf32> -> vector<16x128xf32>
    %126 = arith.subf %123, %125 : vector<16x128xf32>
    %c127_i32_35 = arith.constant 127 : i32
    %127 = tpu.dynamic_rotate %126 by %c127_i32_35 dim 1 : vector<16x128xf32>, i32 -> vector<16x128xf32>
    %128 = arith.mulf %127, %99 : vector<16x128xf32>
    %cst_36 = arith.constant 3.000000e+00 : f32
    %129 = vector.broadcast %cst_36 : f32 to vector<16x128xf32>
    %130 = arith.mulf %129, %128 : vector<16x128xf32>
    %cst_37 = arith.constant 1.000000e+01 : f32
    %131 = vector.broadcast %cst_37 : f32 to vector<16x128xf32>
    %132 = arith.mulf %131, %126 : vector<16x128xf32>
    %133 = arith.addf %130, %132 : vector<16x128xf32>
    %c1_i32_38 = arith.constant 1 : i32
    %134 = tpu.dynamic_rotate %126 by %c1_i32_38 dim 1 : vector<16x128xf32>, i32 -> vector<16x128xf32>
    %135 = arith.mulf %134, %103 : vector<16x128xf32>
    %cst_39 = arith.constant 3.000000e+00 : f32
    %136 = vector.broadcast %cst_39 : f32 to vector<16x128xf32>
    %137 = arith.mulf %136, %135 : vector<16x128xf32>
    %138 = arith.addf %133, %137 : vector<16x128xf32>
    %139 = arith.mulf %121, %121 : vector<16x128xf32>
    %140 = arith.mulf %138, %138 : vector<16x128xf32>
    %141 = arith.addf %139, %140 : vector<16x128xf32>
    %cst_40 = arith.constant 9.99999997E-7 : f32
    %142 = vector.broadcast %cst_40 : f32 to vector<16x128xf32>
    %143 = arith.addf %141, %142 : vector<16x128xf32>
    %c127_i32_41 = arith.constant 127 : i32
    %144 = tpu.dynamic_rotate %1 by %c127_i32_41 dim 1 : vector<16x128xf32>, i32 -> vector<16x128xf32>
    %145 = arith.mulf %144, %99 : vector<16x128xf32>
    %c1_i32_42 = arith.constant 1 : i32
    %146 = tpu.dynamic_rotate %1 by %c1_i32_42 dim 1 : vector<16x128xf32>, i32 -> vector<16x128xf32>
    %147 = arith.mulf %146, %103 : vector<16x128xf32>
    %148 = arith.subf %145, %147 : vector<16x128xf32>
    %149 = vector.extract_strided_slice %148 {offsets = [1, 0], sizes = [15, 128], strides = [1, 1]} : vector<16x128xf32> to vector<15x128xf32>
    %150 = tpu.concatenate %149, %104 in 0 : vector<15x128xf32>, vector<1x128xf32> -> vector<16x128xf32>
    %cst_43 = arith.constant 3.000000e+00 : f32
    %151 = vector.broadcast %cst_43 : f32 to vector<16x128xf32>
    %152 = arith.mulf %151, %150 : vector<16x128xf32>
    %cst_44 = arith.constant 1.000000e+01 : f32
    %153 = vector.broadcast %cst_44 : f32 to vector<16x128xf32>
    %154 = arith.mulf %153, %148 : vector<16x128xf32>
    %155 = arith.addf %152, %154 : vector<16x128xf32>
    %156 = vector.extract_strided_slice %148 {offsets = [0, 0], sizes = [15, 128], strides = [1, 1]} : vector<16x128xf32> to vector<15x128xf32>
    %157 = tpu.concatenate %104, %156 in 0 : vector<1x128xf32>, vector<15x128xf32> -> vector<16x128xf32>
    %cst_45 = arith.constant 3.000000e+00 : f32
    %158 = vector.broadcast %cst_45 : f32 to vector<16x128xf32>
    %159 = arith.mulf %158, %157 : vector<16x128xf32>
    %160 = arith.addf %155, %159 : vector<16x128xf32>
    %161 = vector.extract_strided_slice %1 {offsets = [1, 0], sizes = [15, 128], strides = [1, 1]} : vector<16x128xf32> to vector<15x128xf32>
    %162 = tpu.concatenate %161, %104 in 0 : vector<15x128xf32>, vector<1x128xf32> -> vector<16x128xf32>
    %163 = vector.extract_strided_slice %1 {offsets = [0, 0], sizes = [15, 128], strides = [1, 1]} : vector<16x128xf32> to vector<15x128xf32>
    %164 = tpu.concatenate %104, %163 in 0 : vector<1x128xf32>, vector<15x128xf32> -> vector<16x128xf32>
    %165 = arith.subf %162, %164 : vector<16x128xf32>
    %c127_i32_46 = arith.constant 127 : i32
    %166 = tpu.dynamic_rotate %165 by %c127_i32_46 dim 1 : vector<16x128xf32>, i32 -> vector<16x128xf32>
    %167 = arith.mulf %166, %99 : vector<16x128xf32>
    %cst_47 = arith.constant 3.000000e+00 : f32
    %168 = vector.broadcast %cst_47 : f32 to vector<16x128xf32>
    %169 = arith.mulf %168, %167 : vector<16x128xf32>
    %cst_48 = arith.constant 1.000000e+01 : f32
    %170 = vector.broadcast %cst_48 : f32 to vector<16x128xf32>
    %171 = arith.mulf %170, %165 : vector<16x128xf32>
    %172 = arith.addf %169, %171 : vector<16x128xf32>
    %c1_i32_49 = arith.constant 1 : i32
    %173 = tpu.dynamic_rotate %165 by %c1_i32_49 dim 1 : vector<16x128xf32>, i32 -> vector<16x128xf32>
    %174 = arith.mulf %173, %103 : vector<16x128xf32>
    %cst_50 = arith.constant 3.000000e+00 : f32
    %175 = vector.broadcast %cst_50 : f32 to vector<16x128xf32>
    %176 = arith.mulf %175, %174 : vector<16x128xf32>
    %177 = arith.addf %172, %176 : vector<16x128xf32>
    %178 = arith.mulf %160, %160 : vector<16x128xf32>
    %179 = arith.mulf %177, %177 : vector<16x128xf32>
    %180 = arith.addf %178, %179 : vector<16x128xf32>
    %cst_51 = arith.constant 9.99999997E-7 : f32
    %181 = vector.broadcast %cst_51 : f32 to vector<16x128xf32>
    %182 = arith.addf %180, %181 : vector<16x128xf32>
    %183 = arith.mulf %143, %182 : vector<16x128xf32>
    %184 = math.sqrt %183 : vector<16x128xf32>
    %cst_52 = arith.constant 2.000000e+00 : f32
    %185 = vector.broadcast %cst_52 : f32 to vector<16x128xf32>
    %186 = arith.mulf %185, %184 : vector<16x128xf32>
    %cst_53 = arith.constant 8.99999984E-4 : f32
    %187 = vector.broadcast %cst_53 : f32 to vector<16x128xf32>
    %188 = arith.addf %186, %187 : vector<16x128xf32>
    %189 = arith.addf %143, %182 : vector<16x128xf32>
    %cst_54 = arith.constant 8.99999984E-4 : f32
    %190 = vector.broadcast %cst_54 : f32 to vector<16x128xf32>
    %191 = arith.addf %189, %190 : vector<16x128xf32>
    %192 = tpu.reciprocal %191 : vector<16x128xf32> -> vector<16x128xf32>
    %193 = arith.mulf %188, %192 : vector<16x128xf32>
    %cst_55 = arith.constant 2.000000e+00 : f32
    %194 = vector.broadcast %cst_55 : f32 to vector<16x128xf32>
    %195 = arith.mulf %194, %2 : vector<16x128xf32>
    %196 = arith.mulf %195, %3 : vector<16x128xf32>
    %cst_56 = arith.constant 9.99999974E-5 : f32
    %197 = vector.broadcast %cst_56 : f32 to vector<16x128xf32>
    %198 = arith.addf %196, %197 : vector<16x128xf32>
    %199 = arith.mulf %2, %2 : vector<16x128xf32>
    %200 = arith.mulf %3, %3 : vector<16x128xf32>
    %201 = arith.addf %199, %200 : vector<16x128xf32>
    %cst_57 = arith.constant 9.99999974E-5 : f32
    %202 = vector.broadcast %cst_57 : f32 to vector<16x128xf32>
    %203 = arith.addf %201, %202 : vector<16x128xf32>
    %204 = tpu.reciprocal %203 : vector<16x128xf32> -> vector<16x128xf32>
    %205 = arith.mulf %198, %204 : vector<16x128xf32>
    %206 = arith.addf %2, %3 : vector<16x128xf32>
    %cst_58 = arith.constant 5.000000e-01 : f32
    %207 = vector.broadcast %cst_58 : f32 to vector<16x128xf32>
    %208 = arith.mulf %207, %206 : vector<16x128xf32>
    %209 = arith.mulf %205, %193 : vector<16x128xf32>
    %210 = arith.mulf %209, %95 : vector<16x128xf32>
    %211 = arith.mulf %210, %208 : vector<16x128xf32>
    %212 = vector.shape_cast %211 : vector<16x128xf32> to vector<1x16x128xf32>
    %cst_59 = arith.constant dense<0.000000e+00> : vector<1xf32>
    %213 = vector.multi_reduction <add>, %212, %cst_59 [1, 2] : vector<1x16x128xf32> to vector<1xf32>
    %214 = vector.shape_cast %213 : vector<1xf32> to vector<1x1x1xf32>
    %215 = vector.extract %214[0, 0, 0] : f32 from vector<1x1x1xf32>
    %216 = vector.shape_cast %208 : vector<16x128xf32> to vector<1x16x128xf32>
    %cst_60 = arith.constant dense<0.000000e+00> : vector<1xf32>
    %217 = vector.multi_reduction <add>, %216, %cst_60 [1, 2] : vector<1x16x128xf32> to vector<1xf32>
    %218 = vector.shape_cast %217 : vector<1xf32> to vector<1x1x1xf32>
    %219 = vector.extract %218[0, 0, 0] : f32 from vector<1x1x1xf32>
    %220 = tpu.iota {dimensions = array<i32: 0>} : vector<8x128xi32>
    %221 = tpu.iota {dimensions = array<i32: 1>} : vector<8x128xi32>
    %c0_i32_61 = arith.constant 0 : i32
    %222 = vector.broadcast %c0_i32_61 : i32 to vector<8x128xi32>
    %223 = arith.cmpi eq, %220, %222 : vector<8x128xi32>
    %c0_i32_62 = arith.constant 0 : i32
    %224 = vector.broadcast %c0_i32_62 : i32 to vector<8x128xi32>
    %225 = arith.cmpi eq, %221, %224 : vector<8x128xi32>
    %226 = arith.andi %223, %225 : vector<8x128xi1>
    %cst_63 = arith.constant 0.000000e+00 : f32
    %227 = vector.broadcast %215 : f32 to vector<8x128xf32>
    %228 = vector.broadcast %cst_63 : f32 to vector<8x128xf32>
    %229 = arith.select %226, %227, %228 : vector<8x128xi1>, vector<8x128xf32>
    %c0_i32_64 = arith.constant 0 : i32
    %230 = vector.broadcast %c0_i32_64 : i32 to vector<8x128xi32>
    %231 = arith.cmpi eq, %220, %230 : vector<8x128xi32>
    %c1_i32_65 = arith.constant 1 : i32
    %232 = vector.broadcast %c1_i32_65 : i32 to vector<8x128xi32>
    %233 = arith.cmpi eq, %221, %232 : vector<8x128xi32>
    %234 = arith.andi %231, %233 : vector<8x128xi1>
    %cst_66 = arith.constant 0.000000e+00 : f32
    %235 = vector.broadcast %219 : f32 to vector<8x128xf32>
    %236 = vector.broadcast %cst_66 : f32 to vector<8x128xf32>
    %237 = arith.select %234, %235, %236 : vector<8x128xi1>, vector<8x128xf32>
    %238 = arith.addf %229, %237 : vector<8x128xf32>
    %c0_67 = arith.constant 0 : index
    %c0_68 = arith.constant 0 : index
    %c0_69 = arith.constant 0 : index
    %239 = vector.load %arg6[%c0_67, %c0_68, %c0_69] : memref<1x8x128xf32, #tpu.memory_space<vmem>>, vector<1x8x128xf32>
    %240 = vector.shape_cast %239 : vector<1x8x128xf32> to vector<8x128xf32>
    %241 = vector.shape_cast %238 : vector<8x128xf32> to vector<1x8x128xf32>
    tpu.vector_store %arg6[%c0_67, %c0_68, %c0_69], %241 {strides = array<i32>} : memref<1x8x128xf32, #tpu.memory_space<vmem>>, vector<1x8x128xf32>,
    return
  }
  func.func @transform_0(%arg0: i32) -> (i32, i32) {
    %c0_i32 = arith.constant 0 : i32
    %c0_i32_0 = arith.constant 0 : i32
    return %c0_i32, %arg0 : i32, i32
  }
  func.func @transform_1(%arg0: i32) -> (i32, i32) {
    %c0_i32 = arith.constant 0 : i32
    %c0_i32_0 = arith.constant 0 : i32
    return %c0_i32, %arg0 : i32, i32
  }
  func.func @transform_2(%arg0: i32) -> (i32, i32) {
    %c0_i32 = arith.constant 0 : i32
    %c0_i32_0 = arith.constant 0 : i32
    return %c0_i32, %arg0 : i32, i32
  }
  func.func @transform_3(%arg0: i32) -> (i32, i32) {
    %c0_i32 = arith.constant 0 : i32
    %c0_i32_0 = arith.constant 0 : i32
    return %c0_i32, %arg0 : i32, i32
  }
  func.func @transform_4(%arg0: i32) -> (i32, i32) {
    %c0_i32 = arith.constant 0 : i32
    %c0_i32_0 = arith.constant 0 : i32
    %c0_i32_1 = arith.constant 0 : i32
    return %c0_i32, %c0_i32_0 : i32, i32
  }
  func.func @transform_5(%arg0: i32) -> (i32, i32, i32) {
    %c0_i32 = arith.constant 0 : i32
    %c0_i32_0 = arith.constant 0 : i32
    %c0_i32_1 = arith.constant 0 : i32
    return %arg0, %c0_i32, %c0_i32_0 : i32, i32, i32
  }
}

</mosaic_0001>

<llo_original>
// kernel: fsim_loss.2
$region0: #{fsim_loss.2}
  #allocation0 [shape = 'u32[]', space=smem, size = 0x4, offset = 0x4, fixed_abs, tag = 'smem constant byte address 0x4 - core index']
  #allocation1 [shape = 'u32[72,128]{1,0:T(1,128)}', space=vmem, size = 0x9000, scoped, tag = 'internal scratch']
  %s0 = inlined_call_operand.vmem [shape: f32[16,2,8,256], index: 0, kind: input, shape index: {}]
  %s1 = inlined_call_operand.vmem [shape: f32[16,2], index: 1, kind: input, shape index: {}]
  %s2 = inlined_call_operand.vmem [shape: f32[16,2], index: 2, kind: input, shape index: {}]
  %s3 = inlined_call_operand.vmem [shape: f32[2,8,256], index: 3, kind: output, shape index: {}]
  %s4 = sld [smem:[#allocation0]]
  $region61: #{fsim_loss.2} parent=0
    _
  %s6 = ssub.s32 1, %s4
  %s7 = scalar_select 0, %s6, %s4
  $region1: #{fsim_loss.2} parent=0
    #allocation2 [shape = 'u8[8192]{0}', space=smem, size = 0x2000, scoped, tag = 'input window, operand 1, single buffered']
    #allocation3 [shape = 's32[2]{0}', space=sflag, size = 0x8, scoped, tag = 'scoped memory for fsim_loss.2']
    #allocation4 [shape = 'u8[8192]{0}', space=smem, size = 0x2000, scoped, tag = 'input window, operand 2, single buffered']
    #allocation5 [shape = 's32[1]{0}', space=sflag, size = 0x4, scoped, tag = 'scoped memory for fsim_loss.2']
    %8 = vsyncpa [#allocation3], 0
    %9 = vsyncpa [#allocation5], 0
    loop: start=0, step=1, limit=34
    $region2: #{fsim_loss.2} parent=1 // loop_pre_header
      _
    $region3: #{fsim_loss.2} parent=1 // loop_header
      %s11 = sphi 0, %s15
      %p12 = scmp.ge.s32.totalorder %s11, 34
      %s18 = sphi 0, %s37
      %s19 = sphi 0, %s33
      %s20 = sphi 0, %s29
      %s21 = sphi 0, %s18
      %s22 = sphi 0, %s19
      %s23 = sphi 0, %s20
      %s24 = sphi 0, %s21
      %s25 = sphi 0, %s22
      %s26 = sphi 0, %s23
      %s44 = sphi 0, %s46
      %s47 = sphi 0, %s44
      %s48 = sphi 0, %s47
      %s64 = sphi 0, %s48
      %s68 = sphi 0, %s68
      %s70 = sphi 0, %s68
      %s71 = sphi 0, %s70
      %s85 = sphi 0, %s71
      %s89 = sphi 0, %s89
      %s91 = sphi 0, %s89
      %s92 = sphi 0, %s91
      %s106 = sphi 0, %s92
      %s114 = sphi 0, %s116
      %s117 = sphi 0, %s114
      %s118 = sphi 0, %s117
      %s134 = sphi 0, %s118
    $region4: #{fsim_loss.2} parent=1 // loop_header_branch
      %14 = sbr.rel (%p12) target = $region8
    $region5: #{fsim_loss.2} parent=1 // loop_body
      %s16 = ssub.s32 %s11, 1
      %s17 = ssub.s32 %s11, 2
      %s27 = sadd.s32 1, %s20
      %p28 = scmp.ge.s32.totalorder %s27, 16
      %s29 = scalar_select %p28, 0, %s27
      %s30 = sadd.s32 1, %s19
      %s31 = scalar_select %p28, %s30, %s19
      %p32 = scmp.ge.s32.totalorder %s31, 1
      %s33 = scalar_select %p32, 0, %s31
      %s34 = sadd.s32 1, %s18
      %s35 = scalar_select %p32, %s34, %s18
      %p36 = scmp.ge.s32.totalorder %s35, 2
      %s37 = scalar_select %p36, 0, %s35
      %s38 = ssub.s32 %s20, %s29
      %s39 = ssub.s32 %s18, %s37
      %s40 = sor.u32 %s38, %s39
      %s41 = ssub.s32 %s19, %s33
      %s42 = sor.u32 %s40, %s41
      %p43 = scmp.eq.s32.totalorder %s42, 0
      %s45 = sadd.s32 %s44, 1
      %s46 = scalar_select %p43, %s44, %s45
      %p49 = pneg %p43
      %p50 = scmp.eq.s32.totalorder %s11, 31
      %p51 = por %p49, %p50
      %p52 = scmp.ne.s32.totalorder %s44, %s47
      %p53 = scmp.eq.s32.totalorder %s11, 0
      %p54 = por %p52, %p53
      %p55 = scmp.ne.s32.totalorder %s44, %s47
      %p56 = scmp.eq.s32.totalorder %s16, 31
      %p57 = por %p55, %p56
      %p58 = scmp.ne.s32.totalorder %s47, %s48
      %p59 = scmp.eq.s32.totalorder %s16, 0
      %p60 = por %p58, %p59
      %p61 = scmp.ne.s32.totalorder %s47, %s48
      %p62 = scmp.eq.s32.totalorder %s17, 31
      %p63 = por %p61, %p62
      %p65 = scmp.ne.s32.totalorder %s48, %s64
      %p66 = scmp.eq.s32.totalorder %s17, 0
      %p67 = por %p65, %p66
      %s69 = sadd.s32 %s68, 1
      %p72 = scmp.eq.s32.totalorder %s11, 31
      %p73 = scmp.ne.s32.totalorder %s68, %s70
      %p74 = scmp.eq.s32.totalorder %s11, 0
      %p75 = por %p73, %p74
      %p76 = scmp.ne.s32.totalorder %s68, %s70
      %p77 = scmp.eq.s32.totalorder %s16, 31
      %p78 = por %p76, %p77
      %p79 = scmp.ne.s32.totalorder %s70, %s71
      %p80 = scmp.eq.s32.totalorder %s16, 0
      %p81 = por %p79, %p80
      %p82 = scmp.ne.s32.totalorder %s70, %s71
      %p83 = scmp.eq.s32.totalorder %s17, 31
      %p84 = por %p82, %p83
      %p86 = scmp.ne.s32.totalorder %s71, %s85
      %p87 = scmp.eq.s32.totalorder %s17, 0
      %p88 = por %p86, %p87
      %s90 = sadd.s32 %s89, 1
      %p93 = scmp.eq.s32.totalorder %s11, 31
      %p94 = scmp.ne.s32.totalorder %s89, %s91
      %p95 = scmp.eq.s32.totalorder %s11, 0
      %p96 = por %p94, %p95
      %p97 = scmp.ne.s32.totalorder %s89, %s91
      %p98 = scmp.eq.s32.totalorder %s16, 31
      %p99 = por %p97, %p98
      %p100 = scmp.ne.s32.totalorder %s91, %s92
      %p101 = scmp.eq.s32.totalorder %s16, 0
      %p102 = por %p100, %p101
      %p103 = scmp.ne.s32.totalorder %s91, %s92
      %p104 = scmp.eq.s32.totalorder %s17, 31
      %p105 = por %p103, %p104
      %p107 = scmp.ne.s32.totalorder %s92, %s106
      %p108 = scmp.eq.s32.totalorder %s17, 0
      %p109 = por %p107, %p108
      %s110 = ssub.s32 %s18, %s37
      %s111 = ssub.s32 %s19, %s33
      %s112 = sor.u32 %s110, %s111
      %p113 = scmp.eq.s32.totalorder %s112, 0
      %s115 = sadd.s32 %s114, 1
      %s116 = scalar_select %p113, %s114, %s115
      %p119 = pneg %p113
      %p120 = scmp.eq.s32.totalorder %s11, 31
      %p121 = por %p119, %p120
      %p122 = scmp.ne.s32.totalorder %s114, %s117
      %p123 = scmp.eq.s32.totalorder %s11, 0
      %p124 = por %p122, %p123
      %p125 = scmp.ne.s32.totalorder %s114, %s117
      %p126 = scmp.eq.s32.totalorder %s16, 31
      %p127 = por %p125, %p126
      %p128 = scmp.ne.s32.totalorder %s117, %s118
      %p129 = scmp.eq.s32.totalorder %s16, 0
      %p130 = por %p128, %p129
      %p131 = scmp.ne.s32.totalorder %s117, %s118
      %p132 = scmp.eq.s32.totalorder %s17, 31
      %p133 = por %p131, %p132
      %p135 = scmp.ne.s32.totalorder %s118, %s134
      %p136 = scmp.eq.s32.totalorder %s17, 0
      %p137 = por %p135, %p136
      %p138 = scmp.le.s32.totalorder 1, %s11
      %p139 = scmp.lt.s32.totalorder %s11, 33
      %p140 = pnand %p138, %p139
      %p141 = pneg %p140
      // Predicated region
      $region9: #{fsim_loss.2} parent=5 // pred_check
        _
      $region10: #{fsim_loss.2} parent=5 // pred_check_branch
        %143 = sbr.rel (%p140) target = $region12
      $region11: #{fsim_loss.2} parent=5 // pred_region
        %s144 = ssub.s32 %s11, 1
        // Predicated region
        $region13: #{fsim_loss.2} parent=11 // pred_check
          %p145 = pneg %p81
        $region14: #{fsim_loss.2} parent=11 // pred_check_branch
          %147 = sbr.rel (%p145) target = $region16
        $region15: #{fsim_loss.2} parent=11 // pred_region
          %149 = vsyncadd [#allocation3], 0
          %s150 = sshll.u32 %s1, 4
          %s151 = int_to_ptr.vmem [resolvable:$true] %s150
          %156 = dma.vmem_to_smem %s151, 256, [#allocation2], [#allocation3], 128, 128, 8
        $region16: #{fsim_loss.2} parent=11 // pred_fallthru
          _
        // Predicated region
        $region17: #{fsim_loss.2} parent=11 // pred_check
          %p157 = pneg %p102
        $region18: #{fsim_loss.2} parent=11 // pred_check_branch
          %159 = sbr.rel (%p157) target = $region20
        $region19: #{fsim_loss.2} parent=11 // pred_region
          %161 = vsyncadd [#allocation5], 0
          %s162 = sshll.u32 %s2, 4
          %s163 = int_to_ptr.vmem [resolvable:$true] %s162
          %168 = dma.vmem_to_smem %s163, 256, [#allocation4], [#allocation5], 128, 128, 8
        $region20: #{fsim_loss.2} parent=11 // pred_fallthru
          _
      $region12: #{fsim_loss.2} parent=5 // pred_fallthru
        _
      %p169 = scmp.lt.s32.totalorder %s11, 32
      // Predicated region
      $region21: #{fsim_loss.2} parent=5 // pred_check
        %p170 = pneg %p169
      $region22: #{fsim_loss.2} parent=5 // pred_check_branch
        %172 = sbr.rel (%p170) target = $region24
      $region23: #{fsim_loss.2} parent=5 // pred_region
        // Predicated region
        $region25: #{fsim_loss.2} parent=23 // pred_check
          %p173 = pneg %p54
        $region26: #{fsim_loss.2} parent=23 // pred_check_branch
          %175 = sbr.rel (%p173) target = $region28
        $region27: #{fsim_loss.2} parent=23 // pred_region
          %s176 = smul.u32 2, %s19
          %p177 = scmp.lt.s32.totalorder %s20, 15
          %s178 = scalar_select %p177, %s20, 15
          %p179 = scmp.lt.s32.totalorder %s18, 1
          %s180 = scalar_select %p179, %s18, 1
          %p181 = scmp.lt.s32.totalorder %s176, 1
          %s182 = scalar_select %p181, %s176, 1
          %s183 = smul.addr %s180, 2
          %s184 = sadd.s32 %s182, %s183
          %s185 = smul.addr %s178, 4
          %s186 = sadd.s32 %s184, %s185
          %s187 = smul.addr %s186, 8
          %s188 = scalar_lea.vmem %s0, %s187
          %s189 = smul.u32 2, %s19
        $region28: #{fsim_loss.2} parent=23 // pred_fallthru
          _
      $region24: #{fsim_loss.2} parent=5 // pred_fallthru
        _
      %p190 = scmp.le.s32.totalorder 1, %s11
      %p191 = scmp.lt.s32.totalorder %s11, 33
      %p192 = pnand %p190, %p191
      %p193 = pneg %p192
      // Predicated region
      $region29: #{fsim_loss.2} parent=5 // pred_check
        _
      $region30: #{fsim_loss.2} parent=5 // pred_check_branch
        %195 = sbr.rel (%p192) target = $region32
      $region31: #{fsim_loss.2} parent=5 // pred_region
        %s196 = ssub.s32 %s11, 1
        // Predicated region
        $region33: #{fsim_loss.2} parent=31 // pred_check
          %p197 = pneg %p81
        $region34: #{fsim_loss.2} parent=31 // pred_check_branch
          %199 = sbr.rel (%p197) target = $region36
        $region35: #{fsim_loss.2} parent=31 // pred_region
          %201 = dma.done [#allocation3], 256
        $region36: #{fsim_loss.2} parent=31 // pred_fallthru
          _
        // Predicated region
        $region37: #{fsim_loss.2} parent=31 // pred_check
          %p202 = pneg %p102
        $region38: #{fsim_loss.2} parent=31 // pred_check_branch
          %204 = sbr.rel (%p202) target = $region40
        $region39: #{fsim_loss.2} parent=31 // pred_region
          %206 = dma.done [#allocation5], 256
        $region40: #{fsim_loss.2} parent=31 // pred_fallthru
          _
        %207 = sfence
        %s208 = smul.u32 2, %s22
        %p209 = scmp.lt.s32.totalorder %s23, 15
        %s210 = scalar_select %p209, %s23, 15
        %p211 = scmp.lt.s32.totalorder %s21, 1
        %s212 = scalar_select %p211, %s21, 1
        %p213 = scmp.lt.s32.totalorder %s208, 1
        %s214 = scalar_select %p213, %s208, 1
        %s215 = smul.addr %s212, 2
        %s216 = sadd.s32 %s214, %s215
        %s217 = smul.addr %s210, 4
        %s218 = sadd.s32 %s216, %s217
        %s219 = smul.addr %s218, 8
        %s220 = scalar_lea.vmem %s0, %s219
        %p221 = pneg %p60
        %p222 = pneg %p57
        %p223 = pneg %p81
        %p224 = pneg %p78
        %p225 = pneg %p102
        %p226 = pneg %p99
        %p227 = pneg %p130
        %p228 = pneg %p127
        %s229 = smul.u32 2, %s22
        %p230 = scmp.lt.s32.totalorder %s21, 1
        %s231 = scalar_select %p230, %s21, 1
        %p232 = scmp.lt.s32.totalorder %s229, 1
        %s233 = scalar_select %p232, %s229, 1
        %s234 = smul.addr %s231, 2
        %s235 = sadd.s32 %s233, %s234
        %s236 = smul.addr %s235, 8
        %s237 = scalar_lea.vmem %s3, %s236
        %s238 = smul.u32 2, %s22
        %p239 = scmp.lt.s32.totalorder %s23, 15
        %s240 = scalar_select %p239, %s23, 15
        %p241 = scmp.lt.s32.totalorder %s21, 1
        %s242 = scalar_select %p241, %s21, 1
        %p243 = scmp.lt.s32.totalorder %s238, 1
        %s244 = scalar_select %p243, %s238, 1
        %s245 = smul.addr %s242, 2
        %s246 = sadd.s32 %s244, %s245
        %s247 = smul.addr %s240, 4
        %s248 = sadd.s32 %s246, %s247
        %s249 = smul.addr %s248, 8
        %s250 = scalar_lea.vmem %s0, %s249
        %s251 = smul.u32 2, %s22
        %s252 = smul.u32 2, %s22
        %p253 = scmp.lt.s32.totalorder %s21, 1
        %s254 = scalar_select %p253, %s21, 1
        %p255 = scmp.lt.s32.totalorder %s252, 1
        %s256 = scalar_select %p255, %s252, 1
        %s257 = smul.addr %s254, 2
        %s258 = sadd.s32 %s256, %s257
        %s259 = smul.addr %s258, 8
        %s260 = scalar_lea.vmem %s3, %s259
        %s261 = smul.u32 2, %s22
        %s262 = sshra.s32 %s21, 7
        %s263 = sand.u32 %s21, 127
        %s264 = sadd.s32 %s262, %s23
        %s265 = smul.u32 %s264, 128
        %s266 = sshra.s32 %s21, 7
        %s267 = sand.u32 %s21, 127
        %s268 = sadd.s32 %s265, %s267
        %s269 = sld [smem:[#allocation2 + %s268]]
        %s270 = sld [smem:[#allocation4 + %s268]]
        %v271 = vld [vmem:[%s250] sm:$0xff]
        %v272 = vld [vmem:[%s250 + $0x8] sm:$0xff]
        %v273 = vstv %s269
        %v274 = vsub.f32 %v271, %v273
        %v275 = vsub.f32 %v272, %v273
        %v276 = vmax.f32 %v274, 0.0
        %v277 = vmax.f32 %v275, 0.0
        %v278 = vstv %s270
        %v279 = vmul.f32 %v276, %v278
        %v280 = vmul.f32 %v277, %v278
        %p281 = scmp.eq.s32.totalorder %s23, 0
        // Predicated region
        $region41: #{fsim_loss.2} parent=31 // pred_check
          %p282 = pneg %p281
        $region42: #{fsim_loss.2} parent=31 // pred_check_branch
          %284 = sbr.rel (%p282) target = $region44
        $region43: #{fsim_loss.2} parent=31 // pred_region
          %285 = vst [vmem:[%s260] sm:$0xff] %v279
          %286 = vst [vmem:[%s260 + $0x8] sm:$0xff] %v280
        $region44: #{fsim_loss.2} parent=31 // pred_fallthru
          _
        %p287 = scmp.ne.s32.totalorder %s23, 0
        // Predicated region
        $region45: #{fsim_loss.2} parent=31 // pred_check
          %p288 = pneg %p287
        $region46: #{fsim_loss.2} parent=31 // pred_check_branch
          %290 = sbr.rel (%p288) target = $region48
        $region47: #{fsim_loss.2} parent=31 // pred_region
          %v291 = vld [vmem:[%s260] sm:$0xff]
          %v292 = vld [vmem:[%s260 + $0x8] sm:$0xff]
          %v293 = vadd.f32 %v291, %v279
          %v294 = vadd.f32 %v292, %v280
          %295 = vst [vmem:[%s260] sm:$0xff] %v293
          %296 = vst [vmem:[%s260 + $0x8] sm:$0xff] %v294
        $region48: #{fsim_loss.2} parent=31 // pred_fallthru
          _
        %s297 = smul.u32 2, %s22
        %p298 = scmp.lt.s32.totalorder %s21, 1
        %s299 = scalar_select %p298, %s21, 1
        %p300 = scmp.lt.s32.totalorder %s297, 1
        %s301 = scalar_select %p300, %s297, 1
        %s302 = smul.addr %s299, 2
        %s303 = sadd.s32 %s301, %s302
        %s304 = smul.addr %s303, 8
        %s305 = scalar_lea.vmem %s3, %s304
        // Predicated region
        $region49: #{fsim_loss.2} parent=31 // pred_check
          %p306 = pneg %p127
        $region50: #{fsim_loss.2} parent=31 // pred_check_branch
          %308 = sbr.rel (%p306) target = $region52
        $region51: #{fsim_loss.2} parent=31 // pred_region
          %s309 = smul.u32 2, %s22
        $region52: #{fsim_loss.2} parent=31 // pred_fallthru
          _
      $region32: #{fsim_loss.2} parent=5 // pred_fallthru
        _
      %p310 = scmp.le.s32.totalorder 2, %s11
      // Predicated region
      $region53: #{fsim_loss.2} parent=5 // pred_check
        %p311 = pneg %p310
      $region54: #{fsim_loss.2} parent=5 // pred_check_branch
        %313 = sbr.rel (%p311) target = $region56
      $region55: #{fsim_loss.2} parent=5 // pred_region
        %s314 = ssub.s32 %s11, 2
        // Predicated region
        $region57: #{fsim_loss.2} parent=55 // pred_check
          %p315 = pneg %p133
        $region58: #{fsim_loss.2} parent=55 // pred_check_branch
          %317 = sbr.rel (%p315) target = $region60
        $region59: #{fsim_loss.2} parent=55 // pred_region
          %s318 = smul.u32 2, %s25
          %p319 = scmp.lt.s32.totalorder %s24, 1
          %s320 = scalar_select %p319, %s24, 1
          %p321 = scmp.lt.s32.totalorder %s318, 1
          %s322 = scalar_select %p321, %s318, 1
          %s323 = smul.addr %s320, 2
          %s324 = sadd.s32 %s322, %s323
          %s325 = smul.addr %s324, 8
          %s326 = scalar_lea.vmem %s3, %s325
        $region60: #{fsim_loss.2} parent=55 // pred_fallthru
          _
      $region56: #{fsim_loss.2} parent=5 // pred_fallthru
        _
    $region6: #{fsim_loss.2} parent=1 // loop_footer
      %s15 = sadd.s32 1, %s11
    $region7: #{fsim_loss.2} parent=1 // loop_footer_branch
      %10 = sbr.rel target = $region3
    $region8: #{fsim_loss.2} parent=1 // loop_exit
      _
    %327 = vsyncpa [#allocation3], 1
    %s328 = scalar_lea.sflag [#allocation3], 1
    %329 = vsyncpa %s328, 1
    %330 = vsyncpa [#allocation5], 1

// kernel: squeeze.5
$region0: #{squeeze.5}
  %s0 = inlined_call_operand.vmem [shape: f32[1,8,256], index: 0, kind: input, shape index: {}]
  %s1 = inlined_call_operand.vmem [shape: f32[8,16,16], index: 1, kind: output, shape index: {}]
  %v2 = vld [vmem:[%s0] sm:$0xff]
  %vm3 = vcmask 130048
  %4 = vst.msk [vmem:[%s1] ss:$16 sm:$0x3] %vm3, %v2
  %5 = vst.msk [vmem:[%s1] ss:$16 sm:$0xc] %vm3, %v2
  %6 = vst.msk [vmem:[%s1] ss:$16 sm:$0x30] %vm3, %v2
  %7 = vst.msk [vmem:[%s1] ss:$16 sm:$0xc0] %vm3, %v2
  %s8 = scalar_lea.vmem %s0, 8
  %v9 = vld [vmem:[%s8] sm:$0xff]
  %vm10 = vcmask 130048
  %s11 = scalar_lea.vmem %s1, 8
  %12 = vst.msk [vmem:[%s11] ss:$16 sm:$0x3] %vm10, %v9
  %s13 = scalar_lea.vmem %s1, 8
  %14 = vst.msk [vmem:[%s13] ss:$16 sm:$0xc] %vm10, %v9
  %s15 = scalar_lea.vmem %s1, 8
  %16 = vst.msk [vmem:[%s15] ss:$16 sm:$0x30] %vm10, %v9
  %s17 = scalar_lea.vmem %s1, 8
  %18 = vst.msk [vmem:[%s17] ss:$16 sm:$0xc0] %vm10, %v9
  %v19 = vld.sshfl [vmem:[%s0] sm:$0xff pattern:$0xb3a29180]
  %20 = vrot.lane.b32.xlu0 %v19, 112
  %v21 = vpop.permute.xlu0 %20
  %vm22 = vcmask 130048
  %s23 = scalar_lea.vmem %s1, 1
  %24 = vst.msk [vmem:[%s23] ss:$8 sm:$0xf] %vm22, %v21
  %s25 = scalar_lea.vmem %s1, 1
  %26 = vst.msk [vmem:[%s25] ss:$8 sm:$0xf0] %vm22, %v21
  %s27 = scalar_lea.vmem %s0, 4
  %v28 = vld.sshfl [vmem:[%s27] sm:$0xff pattern:$0xb3a29180]
  %29 = vrot.lane.b32.xlu0 %v28, 112
  %v30 = vpop.permute.xlu0 %29
  %vm31 = vcmask 130048
  %s32 = scalar_lea.vmem %s1, 65
  %33 = vst.msk [vmem:[%s32] ss:$8 sm:$0xf] %vm31, %v30
  %s34 = scalar_lea.vmem %s1, 65
  %35 = vst.msk [vmem:[%s34] ss:$8 sm:$0xf0] %vm31, %v30
  %v36 = vld.sshfl [vmem:[%s0] sm:$0xff pattern:$0xb3a29180]
  %37 = vrot.lane.b32.xlu0 %v36, 96
  %v38 = vpop.permute.xlu0 %37
  %vm39 = vcmask 130048
  %s40 = scalar_lea.vmem %s1, 2
  %41 = vst.msk [vmem:[%s40] ss:$8 sm:$0xf] %vm39, %v38
  %s42 = scalar_lea.vmem %s1, 2
  %43 = vst.msk [vmem:[%s42] ss:$8 sm:$0xf0] %vm39, %v38
  %s44 = scalar_lea.vmem %s0, 4
  %v45 = vld.sshfl [vmem:[%s44] sm:$0xff pattern:$0xb3a29180]
  %46 = vrot.lane.b32.xlu0 %v45, 96
  %v47 = vpop.permute.xlu0 %46
  %vm48 = vcmask 130048
  %s49 = scalar_lea.vmem %s1, 66
  %50 = vst.msk [vmem:[%s49] ss:$8 sm:$0xf] %vm48, %v47
  %s51 = scalar_lea.vmem %s1, 66
  %52 = vst.msk [vmem:[%s51] ss:$8 sm:$0xf0] %vm48, %v47
  %v53 = vld.sshfl [vmem:[%s0] sm:$0xff pattern:$0xb3a29180]
  %54 = vrot.lane.b32.xlu0 %v53, 80
  %v55 = vpop.permute.xlu0 %54
  %vm56 = vcmask 130048
  %s57 = scalar_lea.vmem %s1, 3
  %58 = vst.msk [vmem:[%s57] ss:$8 sm:$0xf] %vm56, %v55
  %s59 = scalar_lea.vmem %s1, 3
  %60 = vst.msk [vmem:[%s59] ss:$8 sm:$0xf0] %vm56, %v55
  %s61 = scalar_lea.vmem %s0, 4
  %v62 = vld.sshfl [vmem:[%s61] sm:$0xff pattern:$0xb3a29180]
  %63 = vrot.lane.b32.xlu0 %v62, 80
  %v64 = vpop.permute.xlu0 %63
  %vm65 = vcmask 130048
  %s66 = scalar_lea.vmem %s1, 67
  %67 = vst.msk [vmem:[%s66] ss:$8 sm:$0xf] %vm65, %v64
  %s68 = scalar_lea.vmem %s1, 67
  %69 = vst.msk [vmem:[%s68] ss:$8 sm:$0xf0] %vm65, %v64
  %v70 = vld.sshfl [vmem:[%s0] sm:$0xff pattern:$0xb3a29180]
  %71 = vrot.lane.b32.xlu0 %v70, 64
  %v72 = vpop.permute.xlu0 %71
  %vm73 = vcmask 130048
  %s74 = scalar_lea.vmem %s1, 4
  %75 = vst.msk [vmem:[%s74] ss:$8 sm:$0xf] %vm73, %v72
  %s76 = scalar_lea.vmem %s1, 4
  %77 = vst.msk [vmem:[%s76] ss:$8 sm:$0xf0] %vm73, %v72
  %s78 = scalar_lea.vmem %s0, 4
  %v79 = vld.sshfl [vmem:[%s78] sm:$0xff pattern:$0xb3a29180]
  %80 = vrot.lane.b32.xlu0 %v79, 64
  %v81 = vpop.permute.xlu0 %80
  %vm82 = vcmask 130048
  %s83 = scalar_lea.vmem %s1, 68
  %84 = vst.msk [vmem:[%s83] ss:$8 sm:$0xf] %vm82, %v81
  %s85 = scalar_lea.vmem %s1, 68
  %86 = vst.msk [vmem:[%s85] ss:$8 sm:$0xf0] %vm82, %v81
  %v87 = vld.sshfl [vmem:[%s0] sm:$0xff pattern:$0xb3a29180]
  %88 = vrot.lane.b32.xlu0 %v87, 48
  %v89 = vpop.permute.xlu0 %88
  %vm90 = vcmask 130048
  %s91 = scalar_lea.vmem %s1, 5
  %92 = vst.msk [vmem:[%s91] ss:$8 sm:$0xf] %vm90, %v89
  %s93 = scalar_lea.vmem %s1, 5
  %94 = vst.msk [vmem:[%s93] ss:$8 sm:$0xf0] %vm90, %v89
  %s95 = scalar_lea.vmem %s0, 4
  %v96 = vld.sshfl [vmem:[%s95] sm:$0xff pattern:$0xb3a29180]
  %97 = vrot.lane.b32.xlu0 %v96, 48
  %v98 = vpop.permute.xlu0 %97
  %vm99 = vcmask 130048
  %s100 = scalar_lea.vmem %s1, 69
  %101 = vst.msk [vmem:[%s100] ss:$8 sm:$0xf] %vm99, %v98
  %s102 = scalar_lea.vmem %s1, 69
  %103 = vst.msk [vmem:[%s102] ss:$8 sm:$0xf0] %vm99, %v98
  %v104 = vld.sshfl [vmem:[%s0] sm:$0xff pattern:$0xb3a29180]
  %105 = vrot.lane.b32.xlu0 %v104, 32
  %v106 = vpop.permute.xlu0 %105
  %vm107 = vcmask 130048
  %s108 = scalar_lea.vmem %s1, 6
  %109 = vst.msk [vmem:[%s108] ss:$8 sm:$0xf] %vm107, %v106
  %s110 = scalar_lea.vmem %s1, 6
  %111 = vst.msk [vmem:[%s110] ss:$8 sm:$0xf0] %vm107, %v106
  %s112 = scalar_lea.vmem %s0, 4
  %v113 = vld.sshfl [vmem:[%s112] sm:$0xff pattern:$0xb3a29180]
  %114 = vrot.lane.b32.xlu0 %v113, 32
  %v115 = vpop.permute.xlu0 %114
  %vm116 = vcmask 130048
  %s117 = scalar_lea.vmem %s1, 70
  %118 = vst.msk [vmem:[%s117] ss:$8 sm:$0xf] %vm116, %v115
  %s119 = scalar_lea.vmem %s1, 70
  %120 = vst.msk [vmem:[%s119] ss:$8 sm:$0xf0] %vm116, %v115
  %v121 = vld.sshfl [vmem:[%s0] sm:$0xff pattern:$0xb3a29180]
  %122 = vrot.lane.b32.xlu0 %v121, 16
  %v123 = vpop.permute.xlu0 %122
  %vm124 = vcmask 130048
  %s125 = scalar_lea.vmem %s1, 7
  %126 = vst.msk [vmem:[%s125] ss:$8 sm:$0xf] %vm124, %v123
  %s127 = scalar_lea.vmem %s1, 7
  %128 = vst.msk [vmem:[%s127] ss:$8 sm:$0xf0] %vm124, %v123
  %s129 = scalar_lea.vmem %s0, 4
  %v130 = vld.sshfl [vmem:[%s129] sm:$0xff pattern:$0xb3a29180]
  %131 = vrot.lane.b32.xlu0 %v130, 16
  %v132 = vpop.permute.xlu0 %131
  %vm133 = vcmask 130048
  %s134 = scalar_lea.vmem %s1, 71
  %135 = vst.msk [vmem:[%s134] ss:$8 sm:$0xf] %vm133, %v132
  %s136 = scalar_lea.vmem %s1, 71
  %137 = vst.msk [vmem:[%s136] ss:$8 sm:$0xf0] %vm133, %v132

// kernel: fsim_loss.3
$region0: #{fsim_loss.3}
  #allocation0 [shape = 'u32[]', space=smem, size = 0x4, offset = 0x4, fixed_abs, tag = 'smem constant byte address 0x4 - core index']
  #allocation1 [shape = 'u32[72,128]{1,0:T(1,128)}', space=vmem, size = 0x9000, scoped, tag = 'internal scratch']
  %s0 = inlined_call_operand.vmem [shape: f32[16,128], index: 0, kind: input, shape index: {}]
  %s1 = inlined_call_operand.vmem [shape: f32[16,128], index: 1, kind: input, shape index: {}]
  %s2 = inlined_call_operand.vmem [shape: f32[16,128], index: 2, kind: input, shape index: {}]
  %s3 = inlined_call_operand.vmem [shape: f32[16,128], index: 3, kind: input, shape index: {}]
  %s4 = inlined_call_operand.vmem [shape: f32[16,16], index: 4, kind: input, shape index: {}]
  %s5 = inlined_call_operand.vmem [shape: f32[1,8,128], index: 5, kind: output, shape index: {}]
  %s6 = sld [smem:[#allocation0]]
  $region30: #{fsim_loss.3} parent=0
    _
  %s8 = ssub.s32 1, %s6
  %s9 = scalar_select 0, %s8, %s6
  // Predicated region
  $region2: #{fsim_loss.3} parent=0 // pred_check
    _
  $region3: #{fsim_loss.3} parent=0 // pred_check_branch
    %11 = sbr.rel (0) target = $region5
  $region4: #{fsim_loss.3} parent=0 // pred_region
    _
  $region5: #{fsim_loss.3} parent=0 // pred_fallthru
    _
  // Predicated region
  $region6: #{fsim_loss.3} parent=0 // pred_check
    _
  $region7: #{fsim_loss.3} parent=0 // pred_check_branch
    %13 = sbr.rel (0) target = $region9
  $region8: #{fsim_loss.3} parent=0 // pred_region
    _
  $region9: #{fsim_loss.3} parent=0 // pred_fallthru
    _
  // Predicated region
  $region10: #{fsim_loss.3} parent=0 // pred_check
    _
  $region11: #{fsim_loss.3} parent=0 // pred_check_branch
    %15 = sbr.rel (0) target = $region13
  $region12: #{fsim_loss.3} parent=0 // pred_region
    _
  $region13: #{fsim_loss.3} parent=0 // pred_fallthru
    _
  // Predicated region
  $region14: #{fsim_loss.3} parent=0 // pred_check
    _
  $region15: #{fsim_loss.3} parent=0 // pred_check_branch
    %17 = sbr.rel (0) target = $region17
  $region16: #{fsim_loss.3} parent=0 // pred_region
    _
  $region17: #{fsim_loss.3} parent=0 // pred_fallthru
    _
  // Predicated region
  $region18: #{fsim_loss.3} parent=0 // pred_check
    _
  $region19: #{fsim_loss.3} parent=0 // pred_check_branch
    %19 = sbr.rel (0) target = $region21
  $region20: #{fsim_loss.3} parent=0 // pred_region
    _
  $region21: #{fsim_loss.3} parent=0 // pred_fallthru
    _
  %v20 = vld [vmem:[%s0] sm:$0xff]
  %v21 = vld [vmem:[%s0 + $0x8] sm:$0xff]
  %v22 = vld [vmem:[%s1] sm:$0xff]
  %v23 = vld [vmem:[%s1 + $0x8] sm:$0xff]
  %v24 = vld [vmem:[%s2] sm:$0xff]
  %v25 = vld [vmem:[%s2 + $0x8] sm:$0xff]
  %v26 = vld [vmem:[%s3] sm:$0xff]
  %v27 = vld [vmem:[%s3 + $0x8] sm:$0xff]
  %v28 = vmul.f32 %v20, %v20
  %v29 = vmul.f32 %v21, %v21
  %v30 = vmul.f32 %v22, %v22
  %v31 = vmul.f32 %v23, %v23
  %v32 = vmul.f32 %v20, %v22
  %v33 = vmul.f32 %v21, %v23
  %v34 = vmul.f32 %v20, 0.26601171
  %v35 = vmul.f32 %v22, 0.26601171
  %v36 = vmul.f32 %v28, 0.26601171
  %v37 = vmul.f32 %v30, 0.26601171
  %v38 = vmul.f32 %v32, 0.26601171
  %v39 = vmul.f32 %v21, 0.26601171
  %v40 = vmul.f32 %v23, 0.26601171
  %v41 = vmul.f32 %v29, 0.26601171
  %v42 = vmul.f32 %v31, 0.26601171
  %v43 = vmul.f32 %v33, 0.26601171
  %44 = vrot.lane.b32.xlu0 %v20, 5
  %v45 = vpop.permute.xlu0 %44
  %46 = vrot.lane.b32.xlu0 %v21, 5
  %v47 = vpop.permute.xlu0 %46
  %48 = vrot.lane.b32.xlu0 %v22, 5
  %v49 = vpop.permute.xlu0 %48
  %50 = vrot.lane.b32.xlu0 %v23, 5
  %v51 = vpop.permute.xlu0 %50
  %52 = vrot.lane.b32.xlu0 %v28, 5
  %v53 = vpop.permute.xlu0 %52
  %54 = vrot.lane.b32.xlu0 %v29, 5
  %v55 = vpop.permute.xlu0 %54
  %56 = vrot.lane.b32.xlu0 %v30, 5
  %v57 = vpop.permute.xlu0 %56
  %58 = vrot.lane.b32.xlu0 %v31, 5
  %v59 = vpop.permute.xlu0 %58
  %60 = vrot.lane.b32.xlu0 %v32, 5
  %v61 = vpop.permute.xlu0 %60
  %62 = vrot.lane.b32.xlu0 %v33, 5
  %v63 = vpop.permute.xlu0 %62
  %v64 = vlaneseq
  %v65 = vand.u32 %v64, 127
  %vm66 = vcmp.lt.s32.totalorder %v65, 5
  %v67 = vsel %vm66, %v57, %v61
  %v68 = vsel %vm66, %v59, %v63
  %v69 = vsel %vm66, %v53, %v57
  %v70 = vsel %vm66, %v55, %v59
  %v71 = vsel %vm66, %v49, %v53
  %v72 = vsel %vm66, %v51, %v55
  %v73 = vsel %vm66, %v45, %v49
  %v74 = vsel %vm66, %v47, %v51
  %v75 = vsel %vm66, %v61, %v45
  %v76 = vsel %vm66, %v63, %v47
  %v77 = vmul.f32 %v75, 0.0010283801
  %v78 = vmul.f32 %v73, 0.0010283801
  %v79 = vmul.f32 %v71, 0.0010283801
  %v80 = vmul.f32 %v69, 0.0010283801
  %v81 = vmul.f32 %v67, 0.0010283801
  %v82 = vmul.f32 %v76, 0.0010283801
  %v83 = vmul.f32 %v74, 0.0010283801
  %v84 = vmul.f32 %v72, 0.0010283801
  %v85 = vmul.f32 %v70, 0.0010283801
  %v86 = vmul.f32 %v68, 0.0010283801
  %v87 = vadd.f32 %v34, %v77
  %v88 = vadd.f32 %v35, %v78
  %v89 = vadd.f32 %v36, %v79
  %v90 = vadd.f32 %v37, %v80
  %v91 = vadd.f32 %v38, %v81
  %v92 = vadd.f32 %v39, %v82
  %v93 = vadd.f32 %v40, %v83
  %v94 = vadd.f32 %v41, %v84
  %v95 = vadd.f32 %v42, %v85
  %v96 = vadd.f32 %v43, %v86
  %97 = vrot.lane.b32.xlu0 %v20, 4
  %v98 = vpop.permute.xlu0 %97
  %99 = vrot.lane.b32.xlu0 %v21, 4
  %v100 = vpop.permute.xlu0 %99
  %101 = vrot.lane.b32.xlu0 %v22, 4
  %v102 = vpop.permute.xlu0 %101
  %103 = vrot.lane.b32.xlu0 %v23, 4
  %v104 = vpop.permute.xlu0 %103
  %105 = vrot.lane.b32.xlu0 %v28, 4
  %v106 = vpop.permute.xlu0 %105
  %107 = vrot.lane.b32.xlu0 %v29, 4
  %v108 = vpop.permute.xlu0 %107
  %109 = vrot.lane.b32.xlu0 %v30, 4
  %v110 = vpop.permute.xlu0 %109
  %111 = vrot.lane.b32.xlu0 %v31, 4
  %v112 = vpop.permute.xlu0 %111
  %113 = vrot.lane.b32.xlu0 %v32, 4
  %v114 = vpop.permute.xlu0 %113
  %115 = vrot.lane.b32.xlu0 %v33, 4
  %v116 = vpop.permute.xlu0 %115
  %vm117 = vcmp.lt.s32.totalorder %v65, 4
  %v118 = vsel %vm117, %v110, %v114
  %v119 = vsel %vm117, %v112, %v116
  %v120 = vsel %vm117, %v106, %v110
  %v121 = vsel %vm117, %v108, %v112
  %v122 = vsel %vm117, %v102, %v106
  %v123 = vsel %vm117, %v104, %v108
  %v124 = vsel %vm117, %v98, %v102
  %v125 = vsel %vm117, %v100, %v104
  %v126 = vsel %vm117, %v114, %v98
  %v127 = vsel %vm117, %v116, %v100
  %v128 = vmul.f32 %v126, 0.007598758
  %v129 = vmul.f32 %v124, 0.007598758
  %v130 = vmul.f32 %v122, 0.007598758
  %v131 = vmul.f32 %v120, 0.007598758
  %v132 = vmul.f32 %v118, 0.007598758
  %v133 = vmul.f32 %v127, 0.007598758
  %v134 = vmul.f32 %v125, 0.007598758
  %v135 = vmul.f32 %v123, 0.007598758
  %v136 = vmul.f32 %v121, 0.007598758
  %v137 = vmul.f32 %v119, 0.007598758
  %v138 = vadd.f32 %v87, %v128
  %v139 = vadd.f32 %v88, %v129
  %v140 = vadd.f32 %v89, %v130
  %v141 = vadd.f32 %v90, %v131
  %v142 = vadd.f32 %v91, %v132
  %v143 = vadd.f32 %v92, %v133
  %v144 = vadd.f32 %v93, %v134
  %v145 = vadd.f32 %v94, %v135
  %v146 = vadd.f32 %v95, %v136
  %v147 = vadd.f32 %v96, %v137
  %148 = vrot.lane.b32.xlu0 %v20, 3
  %v149 = vpop.permute.xlu0 %148
  %150 = vrot.lane.b32.xlu0 %v21, 3
  %v151 = vpop.permute.xlu0 %150
  %152 = vrot.lane.b32.xlu0 %v22, 3
  %v153 = vpop.permute.xlu0 %152
  %154 = vrot.lane.b32.xlu0 %v23, 3
  %v155 = vpop.permute.xlu0 %154
  %156 = vrot.lane.b32.xlu0 %v28, 3
  %v157 = vpop.permute.xlu0 %156
  %158 = vrot.lane.b32.xlu0 %v29, 3
  %v159 = vpop.permute.xlu0 %158
  %160 = vrot.lane.b32.xlu0 %v30, 3
  %v161 = vpop.permute.xlu0 %160
  %162 = vrot.lane.b32.xlu0 %v31, 3
  %v163 = vpop.permute.xlu0 %162
  %164 = vrot.lane.b32.xlu0 %v32, 3
  %v165 = vpop.permute.xlu0 %164
  %166 = vrot.lane.b32.xlu0 %v33, 3
  %v167 = vpop.permute.xlu0 %166
  %vm168 = vcmp.lt.s32.totalorder %v65, 3
  %v169 = vsel %vm168, %v161, %v165
  %v170 = vsel %vm168, %v163, %v167
  %v171 = vsel %vm168, %v157, %v161
  %v172 = vsel %vm168, %v159, %v163
  %v173 = vsel %vm168, %v153, %v157
  %v174 = vsel %vm168, %v155, %v159
  %v175 = vsel %vm168, %v149, %v153
  %v176 = vsel %vm168, %v151, %v155
  %v177 = vsel %vm168, %v165, %v149
  %v178 = vsel %vm168, %v167, %v151
  %v179 = vmul.f32 %v177, 0.036000773
  %v180 = vmul.f32 %v175, 0.036000773
  %v181 = vmul.f32 %v173, 0.036000773
  %v182 = vmul.f32 %v171, 0.036000773
  %v183 = vmul.f32 %v169, 0.036000773
  %v184 = vmul.f32 %v178, 0.036000773
  %v185 = vmul.f32 %v176, 0.036000773
  %v186 = vmul.f32 %v174, 0.036000773
  %v187 = vmul.f32 %v172, 0.036000773
  %v188 = vmul.f32 %v170, 0.036000773
  %v189 = vadd.f32 %v138, %v179
  %v190 = vadd.f32 %v139, %v180
  %v191 = vadd.f32 %v140, %v181
  %v192 = vadd.f32 %v141, %v182
  %v193 = vadd.f32 %v142, %v183
  %v194 = vadd.f32 %v143, %v184
  %v195 = vadd.f32 %v144, %v185
  %v196 = vadd.f32 %v145, %v186
  %v197 = vadd.f32 %v146, %v187
  %v198 = vadd.f32 %v147, %v188
  %199 = vrot.lane.b32.xlu0 %v20, 2
  %v200 = vpop.permute.xlu0 %199
  %201 = vrot.lane.b32.xlu0 %v21, 2
  %v202 = vpop.permute.xlu0 %201
  %203 = vrot.lane.b32.xlu0 %v22, 2
  %v204 = vpop.permute.xlu0 %203
  %205 = vrot.lane.b32.xlu0 %v23, 2
  %v206 = vpop.permute.xlu0 %205
  %207 = vrot.lane.b32.xlu0 %v28, 2
  %v208 = vpop.permute.xlu0 %207
  %209 = vrot.lane.b32.xlu0 %v29, 2
  %v210 = vpop.permute.xlu0 %209
  %211 = vrot.lane.b32.xlu0 %v30, 2
  %v212 = vpop.permute.xlu0 %211
  %213 = vrot.lane.b32.xlu0 %v31, 2
  %v214 = vpop.permute.xlu0 %213
  %215 = vrot.lane.b32.xlu0 %v32, 2
  %v216 = vpop.permute.xlu0 %215
  %217 = vrot.lane.b32.xlu0 %v33, 2
  %v218 = vpop.permute.xlu0 %217
  %vm219 = vcmp.lt.s32.totalorder %v65, 2
  %v220 = vsel %vm219, %v212, %v216
  %v221 = vsel %vm219, %v214, %v218
  %v222 = vsel %vm219, %v208, %v212
  %v223 = vsel %vm219, %v210, %v214
  %v224 = vsel %vm219, %v204, %v208
  %v225 = vsel %vm219, %v206, %v210
  %v226 = vsel %vm219, %v200, %v204
  %v227 = vsel %vm219, %v202, %v206
  %v228 = vsel %vm219, %v216, %v200
  %v229 = vsel %vm219, %v218, %v202
  %v230 = vmul.f32 %v228, 0.10936069
  %v231 = vmul.f32 %v226, 0.10936069
  %v232 = vmul.f32 %v224, 0.10936069
  %v233 = vmul.f32 %v222, 0.10936069
  %v234 = vmul.f32 %v220, 0.10936069
  %v235 = vmul.f32 %v229, 0.10936069
  %v236 = vmul.f32 %v227, 0.10936069
  %v237 = vmul.f32 %v225, 0.10936069
  %v238 = vmul.f32 %v223, 0.10936069
  %v239 = vmul.f32 %v221, 0.10936069
  %v240 = vadd.f32 %v189, %v230
  %v241 = vadd.f32 %v190, %v231
  %v242 = vadd.f32 %v191, %v232
  %v243 = vadd.f32 %v192, %v233
  %v244 = vadd.f32 %v193, %v234
  %v245 = vadd.f32 %v194, %v235
  %v246 = vadd.f32 %v195, %v236
  %v247 = vadd.f32 %v196, %v237
  %v248 = vadd.f32 %v197, %v238
  %v249 = vadd.f32 %v198, %v239
  %250 = vrot.lane.b32.xlu0 %v20, 1
  %v251 = vpop.permute.xlu0 %250
  %252 = vrot.lane.b32.xlu0 %v21, 1
  %v253 = vpop.permute.xlu0 %252
  %254 = vrot.lane.b32.xlu0 %v22, 1
  %v255 = vpop.permute.xlu0 %254
  %256 = vrot.lane.b32.xlu0 %v23, 1
  %v257 = vpop.permute.xlu0 %256
  %258 = vrot.lane.b32.xlu0 %v28, 1
  %v259 = vpop.permute.xlu0 %258
  %260 = vrot.lane.b32.xlu0 %v29, 1
  %v261 = vpop.permute.xlu0 %260
  %262 = vrot.lane.b32.xlu0 %v30, 1
  %v263 = vpop.permute.xlu0 %262
  %264 = vrot.lane.b32.xlu0 %v31, 1
  %v265 = vpop.permute.xlu0 %264
  %266 = vrot.lane.b32.xlu0 %v32, 1
  %v267 = vpop.permute.xlu0 %266
  %268 = vrot.lane.b32.xlu0 %v33, 1
  %v269 = vpop.permute.xlu0 %268
  %vm270 = vcmp.lt.s32.totalorder %v65, 1
  %v271 = vsel %vm270, %v263, %v267
  %v272 = vsel %vm270, %v265, %v269
  %v273 = vsel %vm270, %v259, %v263
  %v274 = vsel %vm270, %v261, %v265
  %v275 = vsel %vm270, %v255, %v259
  %v276 = vsel %vm270, %v257, %v261
  %v277 = vsel %vm270, %v251, %v255
  %v278 = vsel %vm270, %v253, %v257
  %v279 = vsel %vm270, %v267, %v251
  %v280 = vsel %vm270, %v269, %v253
  %v281 = vmul.f32 %v279, 0.21300554
  %v282 = vmul.f32 %v277, 0.21300554
  %v283 = vmul.f32 %v275, 0.21300554
  %v284 = vmul.f32 %v273, 0.21300554
  %v285 = vmul.f32 %v271, 0.21300554
  %v286 = vmul.f32 %v280, 0.21300554
  %v287 = vmul.f32 %v278, 0.21300554
  %v288 = vmul.f32 %v276, 0.21300554
  %v289 = vmul.f32 %v274, 0.21300554
  %v290 = vmul.f32 %v272, 0.21300554
  %v291 = vadd.f32 %v240, %v281
  %v292 = vadd.f32 %v241, %v282
  %v293 = vadd.f32 %v242, %v283
  %v294 = vadd.f32 %v243, %v284
  %v295 = vadd.f32 %v244, %v285
  %v296 = vadd.f32 %v245, %v286
  %v297 = vadd.f32 %v246, %v287
  %v298 = vadd.f32 %v247, %v288
  %v299 = vadd.f32 %v248, %v289
  %v300 = vadd.f32 %v249, %v290
  %301 = vrot.lane.b32.xlu0 %v20, 127
  %v302 = vpop.permute.xlu0 %301
  %303 = vrot.lane.b32.xlu0 %v21, 127
  %v304 = vpop.permute.xlu0 %303
  %305 = vrot.lane.b32.xlu0 %v22, 127
  %v306 = vpop.permute.xlu0 %305
  %307 = vrot.lane.b32.xlu0 %v23, 127
  %v308 = vpop.permute.xlu0 %307
  %309 = vrot.lane.b32.xlu0 %v28, 127
  %v310 = vpop.permute.xlu0 %309
  %311 = vrot.lane.b32.xlu0 %v29, 127
  %v312 = vpop.permute.xlu0 %311
  %313 = vrot.lane.b32.xlu0 %v30, 127
  %v314 = vpop.permute.xlu0 %313
  %315 = vrot.lane.b32.xlu0 %v31, 127
  %v316 = vpop.permute.xlu0 %315
  %317 = vrot.lane.b32.xlu0 %v32, 127
  %v318 = vpop.permute.xlu0 %317
  %319 = vrot.lane.b32.xlu0 %v33, 127
  %v320 = vpop.permute.xlu0 %319
  %vm321 = vcmp.lt.s32.totalorder %v65, 127
  %v322 = vsel %vm321, %v314, %v318
  %v323 = vsel %vm321, %v316, %v320
  %v324 = vsel %vm321, %v310, %v314
  %v325 = vsel %vm321, %v312, %v316
  %v326 = vsel %vm321, %v306, %v310
  %v327 = vsel %vm321, %v308, %v312
  %v328 = vsel %vm321, %v302, %v306
  %v329 = vsel %vm321, %v304, %v308
  %v330 = vsel %vm321, %v318, %v302
  %v331 = vsel %vm321, %v320, %v304
  %v332 = vmul.f32 %v328, 0.21300554
  %v333 = vmul.f32 %v326, 0.21300554
  %v334 = vmul.f32 %v324, 0.21300554
  %v335 = vmul.f32 %v322, 0.21300554
  %v336 = vmul.f32 %v330, 0.21300554
  %v337 = vmul.f32 %v329, 0.21300554
  %v338 = vmul.f32 %v327, 0.21300554
  %v339 = vmul.f32 %v325, 0.21300554
  %v340 = vmul.f32 %v323, 0.21300554
  %v341 = vmul.f32 %v331, 0.21300554
  %v342 = vadd.f32 %v291, %v332
  %v343 = vadd.f32 %v292, %v333
  %v344 = vadd.f32 %v293, %v334
  %v345 = vadd.f32 %v294, %v335
  %v346 = vadd.f32 %v295, %v336
  %v347 = vadd.f32 %v296, %v337
  %v348 = vadd.f32 %v297, %v338
  %v349 = vadd.f32 %v298, %v339
  %v350 = vadd.f32 %v299, %v340
  %v351 = vadd.f32 %v300, %v341
  %352 = vrot.lane.b32.xlu0 %v20, 126
  %v353 = vpop.permute.xlu0 %352
  %354 = vrot.lane.b32.xlu0 %v21, 126
  %v355 = vpop.permute.xlu0 %354
  %356 = vrot.lane.b32.xlu0 %v22, 126
  %v357 = vpop.permute.xlu0 %356
  %358 = vrot.lane.b32.xlu0 %v23, 126
  %v359 = vpop.permute.xlu0 %358
  %360 = vrot.lane.b32.xlu0 %v28, 126
  %v361 = vpop.permute.xlu0 %360
  %362 = vrot.lane.b32.xlu0 %v29, 126
  %v363 = vpop.permute.xlu0 %362
  %364 = vrot.lane.b32.xlu0 %v30, 126
  %v365 = vpop.permute.xlu0 %364
  %366 = vrot.lane.b32.xlu0 %v31, 126
  %v367 = vpop.permute.xlu0 %366
  %368 = vrot.lane.b32.xlu0 %v32, 126
  %v369 = vpop.permute.xlu0 %368
  %370 = vrot.lane.b32.xlu0 %v33, 126
  %v371 = vpop.permute.xlu0 %370
  %vm372 = vcmp.lt.s32.totalorder %v65, 126
  %v373 = vsel %vm372, %v365, %v369
  %v374 = vsel %vm372, %v367, %v371
  %v375 = vsel %vm372, %v361, %v365
  %v376 = vsel %vm372, %v363, %v367
  %v377 = vsel %vm372, %v357, %v361
  %v378 = vsel %vm372, %v359, %v363
  %v379 = vsel %vm372, %v353, %v357
  %v380 = vsel %vm372, %v355, %v359
  %v381 = vsel %vm372, %v369, %v353
  %v382 = vsel %vm372, %v371, %v355
  %v383 = vmul.f32 %v379, 0.10936069
  %v384 = vmul.f32 %v377, 0.10936069
  %v385 = vmul.f32 %v375, 0.10936069
  %v386 = vmul.f32 %v373, 0.10936069
  %v387 = vmul.f32 %v381, 0.10936069
  %v388 = vmul.f32 %v380, 0.10936069
  %v389 = vmul.f32 %v378, 0.10936069
  %v390 = vmul.f32 %v376, 0.10936069
  %v391 = vmul.f32 %v374, 0.10936069
  %v392 = vmul.f32 %v382, 0.10936069
  %v393 = vadd.f32 %v342, %v383
  %v394 = vadd.f32 %v343, %v384
  %v395 = vadd.f32 %v344, %v385
  %v396 = vadd.f32 %v345, %v386
  %v397 = vadd.f32 %v346, %v387
  %v398 = vadd.f32 %v347, %v388
  %v399 = vadd.f32 %v348, %v389
  %v400 = vadd.f32 %v349, %v390
  %v401 = vadd.f32 %v350, %v391
  %v402 = vadd.f32 %v351, %v392
  %403 = vrot.lane.b32.xlu0 %v20, 125
  %v404 = vpop.permute.xlu0 %403
  %405 = vrot.lane.b32.xlu0 %v21, 125
  %v406 = vpop.permute.xlu0 %405
  %407 = vrot.lane.b32.xlu0 %v22, 125
  %v408 = vpop.permute.xlu0 %407
  %409 = vrot.lane.b32.xlu0 %v23, 125
  %v410 = vpop.permute.xlu0 %409
  %411 = vrot.lane.b32.xlu0 %v28, 125
  %v412 = vpop.permute.xlu0 %411
  %413 = vrot.lane.b32.xlu0 %v29, 125
  %v414 = vpop.permute.xlu0 %413
  %415 = vrot.lane.b32.xlu0 %v30, 125
  %v416 = vpop.permute.xlu0 %415
  %417 = vrot.lane.b32.xlu0 %v31, 125
  %v418 = vpop.permute.xlu0 %417
  %419 = vrot.lane.b32.xlu0 %v32, 125
  %v420 = vpop.permute.xlu0 %419
  %421 = vrot.lane.b32.xlu0 %v33, 125
  %v422 = vpop.permute.xlu0 %421
  %vm423 = vcmp.lt.s32.totalorder %v65, 125
  %v424 = vsel %vm423, %v416, %v420
  %v425 = vsel %vm423, %v418, %v422
  %v426 = vsel %vm423, %v412, %v416
  %v427 = vsel %vm423, %v414, %v418
  %v428 = vsel %vm423, %v408, %v412
  %v429 = vsel %vm423, %v410, %v414
  %v430 = vsel %vm423, %v404, %v408
  %v431 = vsel %vm423, %v406, %v410
  %v432 = vsel %vm423, %v420, %v404
  %v433 = vsel %vm423, %v422, %v406
  %v434 = vmul.f32 %v430, 0.036000773
  %v435 = vmul.f32 %v428, 0.036000773
  %v436 = vmul.f32 %v426, 0.036000773
  %v437 = vmul.f32 %v424, 0.036000773
  %v438 = vmul.f32 %v432, 0.036000773
  %v439 = vmul.f32 %v431, 0.036000773
  %v440 = vmul.f32 %v429, 0.036000773
  %v441 = vmul.f32 %v427, 0.036000773
  %v442 = vmul.f32 %v425, 0.036000773
  %v443 = vmul.f32 %v433, 0.036000773
  %v444 = vadd.f32 %v393, %v434
  %v445 = vadd.f32 %v394, %v435
  %v446 = vadd.f32 %v395, %v436
  %v447 = vadd.f32 %v396, %v437
  %v448 = vadd.f32 %v397, %v438
  %v449 = vadd.f32 %v398, %v439
  %v450 = vadd.f32 %v399, %v440
  %v451 = vadd.f32 %v400, %v441
  %v452 = vadd.f32 %v401, %v442
  %v453 = vadd.f32 %v402, %v443
  %454 = vrot.lane.b32.xlu0 %v20, 124
  %v455 = vpop.permute.xlu0 %454
  %456 = vrot.lane.b32.xlu0 %v21, 124
  %v457 = vpop.permute.xlu0 %456
  %458 = vrot.lane.b32.xlu0 %v22, 124
  %v459 = vpop.permute.xlu0 %458
  %460 = vrot.lane.b32.xlu0 %v23, 124
  %v461 = vpop.permute.xlu0 %460
  %462 = vrot.lane.b32.xlu0 %v28, 124
  %v463 = vpop.permute.xlu0 %462
  %464 = vrot.lane.b32.xlu0 %v29, 124
  %v465 = vpop.permute.xlu0 %464
  %466 = vrot.lane.b32.xlu0 %v30, 124
  %v467 = vpop.permute.xlu0 %466
  %468 = vrot.lane.b32.xlu0 %v31, 124
  %v469 = vpop.permute.xlu0 %468
  %470 = vrot.lane.b32.xlu0 %v32, 124
  %v471 = vpop.permute.xlu0 %470
  %472 = vrot.lane.b32.xlu0 %v33, 124
  %v473 = vpop.permute.xlu0 %472
  %vm474 = vcmp.lt.s32.totalorder %v65, 124
  %v475 = vsel %vm474, %v467, %v471
  %v476 = vsel %vm474, %v469, %v473
  %v477 = vsel %vm474, %v463, %v467
  %v478 = vsel %vm474, %v465, %v469
  %v479 = vsel %vm474, %v459, %v463
  %v480 = vsel %vm474, %v461, %v465
  %v481 = vsel %vm474, %v455, %v459
  %v482 = vsel %vm474, %v457, %v461
  %v483 = vsel %vm474, %v471, %v455
  %v484 = vsel %vm474, %v473, %v457
  %v485 = vmul.f32 %v481, 0.007598758
  %v486 = vmul.f32 %v479, 0.007598758
  %v487 = vmul.f32 %v477, 0.007598758
  %v488 = vmul.f32 %v475, 0.007598758
  %v489 = vmul.f32 %v483, 0.007598758
  %v490 = vmul.f32 %v482, 0.007598758
  %v491 = vmul.f32 %v480, 0.007598758
  %v492 = vmul.f32 %v478, 0.007598758
  %v493 = vmul.f32 %v476, 0.007598758
  %v494 = vmul.f32 %v484, 0.007598758
  %v495 = vadd.f32 %v444, %v485
  %v496 = vadd.f32 %v445, %v486
  %v497 = vadd.f32 %v446, %v487
  %v498 = vadd.f32 %v447, %v488
  %v499 = vadd.f32 %v448, %v489
  %v500 = vadd.f32 %v449, %v490
  %v501 = vadd.f32 %v450, %v491
  %v502 = vadd.f32 %v451, %v492
  %v503 = vadd.f32 %v452, %v493
  %v504 = vadd.f32 %v453, %v494
  %505 = vrot.lane.b32.xlu0 %v20, 123
  %v506 = vpop.permute.xlu0 %505
  %507 = vrot.lane.b32.xlu0 %v21, 123
  %v508 = vpop.permute.xlu0 %507
  %509 = vrot.lane.b32.xlu0 %v22, 123
  %v510 = vpop.permute.xlu0 %509
  %511 = vrot.lane.b32.xlu0 %v23, 123
  %v512 = vpop.permute.xlu0 %511
  %513 = vrot.lane.b32.xlu0 %v28, 123
  %v514 = vpop.permute.xlu0 %513
  %515 = vrot.lane.b32.xlu0 %v29, 123
  %v516 = vpop.permute.xlu0 %515
  %517 = vrot.lane.b32.xlu0 %v30, 123
  %v518 = vpop.permute.xlu0 %517
  %519 = vrot.lane.b32.xlu0 %v31, 123
  %v520 = vpop.permute.xlu0 %519
  %521 = vrot.lane.b32.xlu0 %v32, 123
  %v522 = vpop.permute.xlu0 %521
  %523 = vrot.lane.b32.xlu0 %v33, 123
  %v524 = vpop.permute.xlu0 %523
  %vm525 = vcmp.lt.s32.totalorder %v65, 123
  %v526 = vsel %vm525, %v518, %v522
  %v527 = vsel %vm525, %v520, %v524
  %v528 = vsel %vm525, %v514, %v518
  %v529 = vsel %vm525, %v516, %v520
  %v530 = vsel %vm525, %v510, %v514
  %v531 = vsel %vm525, %v512, %v516
  %v532 = vsel %vm525, %v506, %v510
  %v533 = vsel %vm525, %v508, %v512
  %v534 = vsel %vm525, %v522, %v506
  %v535 = vsel %vm525, %v524, %v508
  %v536 = vmul.f32 %v532, 0.0010283801
  %v537 = vmul.f32 %v530, 0.0010283801
  %v538 = vmul.f32 %v528, 0.0010283801
  %v539 = vmul.f32 %v526, 0.0010283801
  %v540 = vmul.f32 %v534, 0.0010283801
  %v541 = vmul.f32 %v533, 0.0010283801
  %v542 = vmul.f32 %v531, 0.0010283801
  %v543 = vmul.f32 %v529, 0.0010283801
  %v544 = vmul.f32 %v527, 0.0010283801
  %v545 = vmul.f32 %v535, 0.0010283801
  %v546 = vadd.f32 %v495, %v536
  %v547 = vadd.f32 %v496, %v537
  %v548 = vadd.f32 %v497, %v538
  %v549 = vadd.f32 %v498, %v539
  %v550 = vadd.f32 %v499, %v540
  %v551 = vadd.f32 %v500, %v541
  %v552 = vadd.f32 %v501, %v542
  %v553 = vadd.f32 %v502, %v543
  %v554 = vadd.f32 %v503, %v544
  %v555 = vadd.f32 %v504, %v545
  %v556 = vld [vmem:[%s4] sm:$0xff]
  %v557 = vld [vmem:[%s4 + $0x8] sm:$0xff]
  %vm558 = vcmask 130048
  %v560 = vsel %vm558, %v556, 0
  %v563 = vsel %vm558, %v557, 0
  %565 = vmatpush.msra.mxu0 0.0
  %566 = vmatpush.msra.mxu0 0.0
  %567 = vmatpush.msra.mxu0 0.0
  %568 = vmatpush.msra.mxu0 0.0
  %569 = vmatpush.msra.mxu0 0.0
  %570 = vmatpush.msra.mxu0 0.0
  %571 = vmatpush.msra.mxu0 0.0
  %572 = vmatpush.msra.mxu0 0.0
  %573 = vmatpush.msra.mxu0 0.0
  %574 = vmatpush.msra.mxu0 0.0
  %575 = vmatpush.msra.mxu0 0.0
  %576 = vmatpush.msra.mxu0 0.0
  %577 = vmatpush.msra.mxu0 0.0
  %578 = vmatpush.msra.mxu0 0.0
  %579 = vmatpush.msra.mxu0 %v551
  %580 = vmatpush.msra.mxu0 %v546
  %581 = vmatmul.f32.gmra.mxu0 %v560
  %v582 = vpop.f32.mrf.mxu0
  %v583 = vadd.f32 0.0, %v582
  %584 = vmatmul.f32.gmra.mxu0 %v563
  %v585 = vpop.f32.mrf.mxu0
  %v586 = vadd.f32 0.0, %v585
  %587 = vdwg.mxu0
  %588 = vmatpush.msra.mxu0 0.0
  %589 = vmatpush.msra.mxu0 0.0
  %590 = vmatpush.msra.mxu0 0.0
  %591 = vmatpush.msra.mxu0 0.0
  %592 = vmatpush.msra.mxu0 0.0
  %593 = vmatpush.msra.mxu0 0.0
  %594 = vmatpush.msra.mxu0 0.0
  %595 = vmatpush.msra.mxu0 0.0
  %596 = vmatpush.msra.mxu0 0.0
  %597 = vmatpush.msra.mxu0 0.0
  %598 = vmatpush.msra.mxu0 0.0
  %599 = vmatpush.msra.mxu0 0.0
  %600 = vmatpush.msra.mxu0 0.0
  %601 = vmatpush.msra.mxu0 0.0
  %602 = vmatpush.msra.mxu0 %v552
  %603 = vmatpush.msra.mxu0 %v547
  %604 = vmatmul.f32.gmra.mxu0 %v560
  %v605 = vpop.f32.mrf.mxu0
  %v606 = vadd.f32 0.0, %v605
  %607 = vmatmul.f32.gmra.mxu0 %v563
  %v608 = vpop.f32.mrf.mxu0
  %v609 = vadd.f32 0.0, %v608
  %610 = vdwg.mxu0
  %611 = vmatpush.msra.mxu0 0.0
  %612 = vmatpush.msra.mxu0 0.0
  %613 = vmatpush.msra.mxu0 0.0
  %614 = vmatpush.msra.mxu0 0.0
  %615 = vmatpush.msra.mxu0 0.0
  %616 = vmatpush.msra.mxu0 0.0
  %617 = vmatpush.msra.mxu0 0.0
  %618 = vmatpush.msra.mxu0 0.0
  %619 = vmatpush.msra.mxu0 0.0
  %620 = vmatpush.msra.mxu0 0.0
  %621 = vmatpush.msra.mxu0 0.0
  %622 = vmatpush.msra.mxu0 0.0
  %623 = vmatpush.msra.mxu0 0.0
  %624 = vmatpush.msra.mxu0 0.0
  %625 = vmatpush.msra.mxu0 %v553
  %626 = vmatpush.msra.mxu0 %v548
  %627 = vmatmul.f32.gmra.mxu0 %v560
  %v628 = vpop.f32.mrf.mxu0
  %v629 = vadd.f32 0.0, %v628
  %630 = vmatmul.f32.gmra.mxu0 %v563
  %v631 = vpop.f32.mrf.mxu0
  %v632 = vadd.f32 0.0, %v631
  %633 = vdwg.mxu0
  %634 = vmatpush.msra.mxu0 0.0
  %635 = vmatpush.msra.mxu0 0.0
  %636 = vmatpush.msra.mxu0 0.0
  %637 = vmatpush.msra.mxu0 0.0
  %638 = vmatpush.msra.mxu0 0.0
  %639 = vmatpush.msra.mxu0 0.0
  %640 = vmatpush.msra.mxu0 0.0
  %641 = vmatpush.msra.mxu0 0.0
  %642 = vmatpush.msra.mxu0 0.0
  %643 = vmatpush.msra.mxu0 0.0
  %644 = vmatpush.msra.mxu0 0.0
  %645 = vmatpush.msra.mxu0 0.0
  %646 = vmatpush.msra.mxu0 0.0
  %647 = vmatpush.msra.mxu0 0.0
  %648 = vmatpush.msra.mxu0 %v554
  %649 = vmatpush.msra.mxu0 %v549
  %650 = vmatmul.f32.gmra.mxu0 %v560
  %v651 = vpop.f32.mrf.mxu0
  %v652 = vadd.f32 0.0, %v651
  %653 = vmatmul.f32.gmra.mxu0 %v563
  %v654 = vpop.f32.mrf.mxu0
  %v655 = vadd.f32 0.0, %v654
  %656 = vdwg.mxu0
  %657 = vmatpush.msra.mxu0 0.0
  %658 = vmatpush.msra.mxu0 0.0
  %659 = vmatpush.msra.mxu0 0.0
  %660 = vmatpush.msra.mxu0 0.0
  %661 = vmatpush.msra.mxu0 0.0
  %662 = vmatpush.msra.mxu0 0.0
  %663 = vmatpush.msra.mxu0 0.0
  %664 = vmatpush.msra.mxu0 0.0
  %665 = vmatpush.msra.mxu0 0.0
  %666 = vmatpush.msra.mxu0 0.0
  %667 = vmatpush.msra.mxu0 0.0
  %668 = vmatpush.msra.mxu0 0.0
  %669 = vmatpush.msra.mxu0 0.0
  %670 = vmatpush.msra.mxu0 0.0
  %671 = vmatpush.msra.mxu0 %v555
  %672 = vmatpush.msra.mxu0 %v550
  %673 = vmatmul.f32.gmra.mxu0 %v560
  %v674 = vpop.f32.mrf.mxu0
  %v675 = vadd.f32 0.0, %v674
  %676 = vmatmul.f32.gmra.mxu0 %v563
  %v677 = vpop.f32.mrf.mxu0
  %v678 = vadd.f32 0.0, %v677
  %679 = vdwg.mxu0
  %v680 = vmul.f32 %v583, %v583
  %v681 = vmul.f32 %v586, %v586
  %v682 = vsub.f32 %v629, %v680
  %v683 = vsub.f32 %v632, %v681
  %v684 = vmul.f32 %v606, %v606
  %v685 = vmul.f32 %v609, %v609
  %v686 = vsub.f32 %v652, %v684
  %v687 = vsub.f32 %v655, %v685
  %v688 = vmul.f32 %v583, %v606
  %v689 = vmul.f32 %v586, %v609
  %v690 = vsub.f32 %v675, %v688
  %v691 = vsub.f32 %v678, %v689
  %v692 = vmul.f32 %v690, 2.0
  %v693 = vmul.f32 %v691, 2.0
  %v694 = vadd.f32 %v692, 0.0009
  %v695 = vadd.f32 %v693, 0.0009
  %v696 = vadd.f32 %v682, %v686
  %v697 = vadd.f32 %v683, %v687
  %v698 = vadd.f32 %v696, 0.0009
  %v699 = vadd.f32 %v697, 0.0009
  %v700 = vrcp.pop %v698
  %v701 = vmul.f32 %v698, %v700
  %v702 = vsub.f32 1.0, %v701
  %v703 = vmul.f32 %v700, %v702
  %v704 = vadd.f32 %v700, %v703
  %vm705 = vweird.f32 %v698
  %vm706 = vweird.f32 %v700
  %vm707 = vmor %vm705, %vm706
  %v708 = vsel %vm707, %v700, %v704
  %v709 = vand.u32 2147483647, %v698
  %vm710 = vcmp.eq.f32.partialorder %v709, 8.507059e+37
  %v711 = vand.u32 %v698, 2147483648
  %v712 = vor.u32 1.1754944e-38, %v711
  %v713 = vsel %vm710, %v712, %v708
  %v714 = vrcp.pop %v699
  %v715 = vmul.f32 %v699, %v714
  %v716 = vsub.f32 1.0, %v715
  %v717 = vmul.f32 %v714, %v716
  %v718 = vadd.f32 %v714, %v717
  %vm719 = vweird.f32 %v699
  %vm720 = vweird.f32 %v714
  %vm721 = vmor %vm719, %vm720
  %v722 = vsel %vm721, %v714, %v718
  %v723 = vand.u32 2147483647, %v699
  %vm724 = vcmp.eq.f32.partialorder %v723, 8.507059e+37
  %v725 = vand.u32 %v699, 2147483648
  %v726 = vor.u32 1.1754944e-38, %v725
  %v727 = vsel %vm724, %v726, %v722
  %v728 = vmul.f32 %v694, %v713
  %v729 = vmul.f32 %v695, %v727
  %vm730 = vcmp.lt.s32.totalorder %v65, 0
  %v731 = vsub.s32 0, %v65
  %v732 = vsel %vm730, %v731, %v65
  %v733 = vshrl.u32 %v732, 4
  %v734 = vand.u32 %v732, 15
  %v735 = vsub.s32 0, %v734
  %v736 = vsel %vm730, %v735, %v734
  %vm737 = vcmp.ne.s32.totalorder %v736, 0
  %vm738 = vcmp.lt.s32.totalorder %v736, 0
  %vm739 = vmand %vm738, %vm737
  %v740 = vadd.s32 %v736, 16
  %v741 = vsel %vm739, %v740, %v736
  %vm742 = vcmp.ge.s32.totalorder %v741, 5
  %vm743 = vcmp.lt.s32.totalorder %v741, 11
  %vm744 = vmand %vm742, %vm743
  %v745 = vsel %vm744, %v728, 1.0
  %v746 = vsel %vm744, %v729, 1.0
  %vm747 = vcmp.ne.s32.totalorder %v741, 15
  %v748 = vsel %vm747, 1, 0
  %v749 = vcvt.s32.f32 %v748
  %vm750 = vcmp.ne.s32.totalorder %v741, 0
  %v751 = vsel %vm750, 1, 0
  %v752 = vcvt.s32.f32 %v751
  %v753 = vmul.f32 %v302, %v749
  %v754 = vmul.f32 %v304, %v749
  %v755 = vmul.f32 %v251, %v752
  %v756 = vmul.f32 %v253, %v752
  %v757 = vsub.f32 %v753, %v755
  %v758 = vsub.f32 %v754, %v756
  %vm761 = vcmask 1046528
  %v762 = vrot.slane %v757, 1
  %v763 = vrot.slane %v758, 1
  %v764 = vsel %vm761, %v762, %v763
  %v767 = vsel %vm761, %v763, 0.0
  %v768 = vmul.f32 %v764, 3.0
  %v769 = vmul.f32 %v767, 3.0
  %v770 = vmul.f32 %v757, 10.0
  %v771 = vmul.f32 %v758, 10.0
  %v772 = vadd.f32 %v768, %v770
  %v773 = vadd.f32 %v769, %v771
  %vm774 = vcmask 1040384
  %v775 = vrot.slane %v757, 7
  %v776 = vrot.slane %v758, 7
  %v777 = vsel %vm774, %v775, %v776
  %v780 = vsel %vm774, 0.0, %v775
  %v781 = vmul.f32 %v780, 3.0
  %v782 = vmul.f32 %v777, 3.0
  %v783 = vadd.f32 %v772, %v781
  %v784 = vadd.f32 %v773, %v782
  %v787 = vrot.slane %v20, 1
  %v788 = vrot.slane %v21, 1
  %v789 = vsel %vm761, %v787, %v788
  %v792 = vsel %vm761, %v788, 0.0
  %v793 = vrot.slane %v20, 7
  %v794 = vrot.slane %v21, 7
  %v795 = vsel %vm774, %v793, %v794
  %v798 = vsel %vm774, 0.0, %v793
  %v799 = vsub.f32 %v789, %v798
  %v800 = vsub.f32 %v792, %v795
  %801 = vrot.lane.b32.xlu0 %v799, 127
  %v802 = vpop.permute.xlu0 %801
  %803 = vrot.lane.b32.xlu0 %v800, 127
  %v804 = vpop.permute.xlu0 %803
  %v805 = vmul.f32 %v802, %v749
  %v806 = vmul.f32 %v804, %v749
  %v807 = vmul.f32 %v805, 3.0
  %v808 = vmul.f32 %v806, 3.0
  %v809 = vmul.f32 %v799, 10.0
  %v810 = vmul.f32 %v800, 10.0
  %v811 = vadd.f32 %v807, %v809
  %v812 = vadd.f32 %v808, %v810
  %813 = vrot.lane.b32.xlu0 %v799, 1
  %v814 = vpop.permute.xlu0 %813
  %815 = vrot.lane.b32.xlu0 %v800, 1
  %v816 = vpop.permute.xlu0 %815
  %v817 = vmul.f32 %v814, %v752
  %v818 = vmul.f32 %v816, %v752
  %v819 = vmul.f32 %v817, 3.0
  %v820 = vmul.f32 %v818, 3.0
  %v821 = vadd.f32 %v811, %v819
  %v822 = vadd.f32 %v812, %v820
  %v823 = vmul.f32 %v783, %v783
  %v824 = vmul.f32 %v784, %v784
  %v825 = vmul.f32 %v821, %v821
  %v826 = vmul.f32 %v822, %v822
  %v827 = vadd.f32 %v823, %v825
  %v828 = vadd.f32 %v824, %v826
  %v829 = vadd.f32 %v827, 1e-06
  %v830 = vadd.f32 %v828, 1e-06
  %v831 = vmul.f32 %v306, %v749
  %v832 = vmul.f32 %v308, %v749
  %v833 = vmul.f32 %v255, %v752
  %v834 = vmul.f32 %v257, %v752
  %v835 = vsub.f32 %v831, %v833
  %v836 = vsub.f32 %v832, %v834
  %v839 = vrot.slane %v835, 1
  %v840 = vrot.slane %v836, 1
  %v841 = vsel %vm761, %v839, %v840
  %v844 = vsel %vm761, %v840, 0.0
  %v845 = vmul.f32 %v841, 3.0
  %v846 = vmul.f32 %v844, 3.0
  %v847 = vmul.f32 %v835, 10.0
  %v848 = vmul.f32 %v836, 10.0
  %v849 = vadd.f32 %v845, %v847
  %v850 = vadd.f32 %v846, %v848
  %v851 = vrot.slane %v835, 7
  %v852 = vrot.slane %v836, 7
  %v853 = vsel %vm774, %v851, %v852
  %v856 = vsel %vm774, 0.0, %v851
  %v857 = vmul.f32 %v856, 3.0
  %v858 = vmul.f32 %v853, 3.0
  %v859 = vadd.f32 %v849, %v857
  %v860 = vadd.f32 %v850, %v858
  %v863 = vrot.slane %v22, 1
  %v864 = vrot.slane %v23, 1
  %v865 = vsel %vm761, %v863, %v864
  %v868 = vsel %vm761, %v864, 0.0
  %v869 = vrot.slane %v22, 7
  %v870 = vrot.slane %v23, 7
  %v871 = vsel %vm774, %v869, %v870
  %v874 = vsel %vm774, 0.0, %v869
  %v875 = vsub.f32 %v865, %v874
  %v876 = vsub.f32 %v868, %v871
  %877 = vrot.lane.b32.xlu0 %v875, 127
  %v878 = vpop.permute.xlu0 %877
  %879 = vrot.lane.b32.xlu0 %v876, 127
  %v880 = vpop.permute.xlu0 %879
  %v881 = vmul.f32 %v878, %v749
  %v882 = vmul.f32 %v880, %v749
  %v883 = vmul.f32 %v881, 3.0
  %v884 = vmul.f32 %v882, 3.0
  %v885 = vmul.f32 %v875, 10.0
  %v886 = vmul.f32 %v876, 10.0
  %v887 = vadd.f32 %v883, %v885
  %v888 = vadd.f32 %v884, %v886
  %889 = vrot.lane.b32.xlu0 %v875, 1
  %v890 = vpop.permute.xlu0 %889
  %891 = vrot.lane.b32.xlu0 %v876, 1
  %v892 = vpop.permute.xlu0 %891
  %v893 = vmul.f32 %v890, %v752
  %v894 = vmul.f32 %v892, %v752
  %v895 = vmul.f32 %v893, 3.0
  %v896 = vmul.f32 %v894, 3.0
  %v897 = vadd.f32 %v887, %v895
  %v898 = vadd.f32 %v888, %v896
  %v899 = vmul.f32 %v859, %v859
  %v900 = vmul.f32 %v860, %v860
  %v901 = vmul.f32 %v897, %v897
  %v902 = vmul.f32 %v898, %v898
  %v903 = vadd.f32 %v899, %v901
  %v904 = vadd.f32 %v900, %v902
  %v905 = vadd.f32 %v903, 1e-06
  %v906 = vadd.f32 %v904, 1e-06
  %v907 = vmul.f32 %v829, %v905
  %v908 = vmul.f32 %v830, %v906
  %v909 = vrsqrt.pop %v907
  %v910 = vmul.f32 %v909, %v907
  %v911 = vmul.f32 %v910, %v909
  %v912 = vmul.f32 0.5, %v911
  %v913 = vsub.f32 1.5, %v912
  %v914 = vmul.f32 %v909, %v913
  %v915 = vmul.f32 %v907, %v914
  %vm916 = vcmp.eq.f32.partialorder %v907, inf
  %v917 = vsel %vm916, %v907, %v915
  %vm918 = vcmp.eq.f32.partialorder %v907, 0.0
  %v919 = vand.u32 %v907, 2147483648
  %v920 = vsel %vm918, %v919, %v917
  %v921 = vrsqrt.pop %v908
  %v922 = vmul.f32 %v921, %v908
  %v923 = vmul.f32 %v922, %v921
  %v924 = vmul.f32 0.5, %v923
  %v925 = vsub.f32 1.5, %v924
  %v926 = vmul.f32 %v921, %v925
  %v927 = vmul.f32 %v908, %v926
  %vm928 = vcmp.eq.f32.partialorder %v908, inf
  %v929 = vsel %vm928, %v908, %v927
  %vm930 = vcmp.eq.f32.partialorder %v908, 0.0
  %v931 = vand.u32 %v908, 2147483648
  %v932 = vsel %vm930, %v931, %v929
  %v933 = vmul.f32 %v920, 2.0
  %v934 = vmul.f32 %v932, 2.0
  %v935 = vadd.f32 %v933, 0.0009
  %v936 = vadd.f32 %v934, 0.0009
  %v937 = vadd.f32 %v829, %v905
  %v938 = vadd.f32 %v830, %v906
  %v939 = vadd.f32 %v937, 0.0009
  %v940 = vadd.f32 %v938, 0.0009
  %v941 = vrcp.pop %v939
  %v942 = vmul.f32 %v939, %v941
  %v943 = vsub.f32 1.0, %v942
  %v944 = vmul.f32 %v941, %v943
  %v945 = vadd.f32 %v941, %v944
  %vm946 = vweird.f32 %v939
  %vm947 = vweird.f32 %v941
  %vm948 = vmor %vm946, %vm947
  %v949 = vsel %vm948, %v941, %v945
  %v950 = vand.u32 2147483647, %v939
  %vm951 = vcmp.eq.f32.partialorder %v950, 8.507059e+37
  %v952 = vand.u32 %v939, 2147483648
  %v953 = vor.u32 1.1754944e-38, %v952
  %v954 = vsel %vm951, %v953, %v949
  %v955 = vrcp.pop %v940
  %v956 = vmul.f32 %v940, %v955
  %v957 = vsub.f32 1.0, %v956
  %v958 = vmul.f32 %v955, %v957
  %v959 = vadd.f32 %v955, %v958
  %vm960 = vweird.f32 %v940
  %vm961 = vweird.f32 %v955
  %vm962 = vmor %vm960, %vm961
  %v963 = vsel %vm962, %v955, %v959
  %v964 = vand.u32 2147483647, %v940
  %vm965 = vcmp.eq.f32.partialorder %v964, 8.507059e+37
  %v966 = vand.u32 %v940, 2147483648
  %v967 = vor.u32 1.1754944e-38, %v966
  %v968 = vsel %vm965, %v967, %v963
  %v969 = vmul.f32 %v935, %v954
  %v970 = vmul.f32 %v936, %v968
  %v971 = vmul.f32 %v24, 2.0
  %v972 = vmul.f32 %v25, 2.0
  %v973 = vmul.f32 %v971, %v26
  %v974 = vmul.f32 %v972, %v27
  %v975 = vadd.f32 %v973, 0.0001
  %v976 = vadd.f32 %v974, 0.0001
  %v977 = vmul.f32 %v24, %v24
  %v978 = vmul.f32 %v25, %v25
  %v979 = vmul.f32 %v26, %v26
  %v980 = vmul.f32 %v27, %v27
  %v981 = vadd.f32 %v977, %v979
  %v982 = vadd.f32 %v978, %v980
  %v983 = vadd.f32 %v981, 0.0001
  %v984 = vadd.f32 %v982, 0.0001
  %v985 = vrcp.pop %v983
  %v986 = vmul.f32 %v983, %v985
  %v987 = vsub.f32 1.0, %v986
  %v988 = vmul.f32 %v985, %v987
  %v989 = vadd.f32 %v985, %v988
  %vm990 = vweird.f32 %v983
  %vm991 = vweird.f32 %v985
  %vm992 = vmor %vm990, %vm991
  %v993 = vsel %vm992, %v985, %v989
  %v994 = vand.u32 2147483647, %v983
  %vm995 = vcmp.eq.f32.partialorder %v994, 8.507059e+37
  %v996 = vand.u32 %v983, 2147483648
  %v997 = vor.u32 1.1754944e-38, %v996
  %v998 = vsel %vm995, %v997, %v993
  %v999 = vrcp.pop %v984
  %v1000 = vmul.f32 %v984, %v999
  %v1001 = vsub.f32 1.0, %v1000
  %v1002 = vmul.f32 %v999, %v1001
  %v1003 = vadd.f32 %v999, %v1002
  %vm1004 = vweird.f32 %v984
  %vm1005 = vweird.f32 %v999
  %vm1006 = vmor %vm1004, %vm1005
  %v1007 = vsel %vm1006, %v999, %v1003
  %v1008 = vand.u32 2147483647, %v984
  %vm1009 = vcmp.eq.f32.partialorder %v1008, 8.507059e+37
  %v1010 = vand.u32 %v984, 2147483648
  %v1011 = vor.u32 1.1754944e-38, %v1010
  %v1012 = vsel %vm1009, %v1011, %v1007
  %v1013 = vmul.f32 %v975, %v998
  %v1014 = vmul.f32 %v976, %v1012
  %v1015 = vadd.f32 %v24, %v26
  %v1016 = vadd.f32 %v25, %v27
  %v1017 = vmul.f32 %v1015, 0.5
  %v1018 = vmul.f32 %v1016, 0.5
  %v1019 = vmul.f32 %v1013, %v969
  %v1020 = vmul.f32 %v1014, %v970
  %v1021 = vmul.f32 %v1019, %v745
  %v1022 = vmul.f32 %v1020, %v746
  %v1023 = vmul.f32 %v1021, %v1017
  %v1024 = vmul.f32 %v1022, %v1018
  %v1025 = vadd.f32 %v1023, %v1024
  %1026 = vadd.xlane.f32.xlu0 %v1025
  %v1027 = vpop.xlane.xlu0 %1026
  %v1028 = vrot.slane %v1027, 4
  %v1029 = vadd.f32 %v1027, %v1028
  %v1030 = vrot.slane %v1029, 2
  %v1031 = vadd.f32 %v1029, %v1030
  %v1032 = vrot.slane %v1031, 1
  %v1033 = vadd.f32 %v1031, %v1032
  %s1034 = vtos %v1033
  %v1035 = vadd.f32 %v1017, %v1018
  %1036 = vadd.xlane.f32.xlu0 %v1035
  %v1037 = vpop.xlane.xlu0 %1036
  %v1038 = vrot.slane %v1037, 4
  %v1039 = vadd.f32 %v1037, %v1038
  %v1040 = vrot.slane %v1039, 2
  %v1041 = vadd.f32 %v1039, %v1040
  %v1042 = vrot.slane %v1041, 1
  %v1043 = vadd.f32 %v1041, %v1042
  %s1044 = vtos %v1043
  %v1045 = vlaneseq
  %v1046 = vshrl.u32 %v1045, 7
  %vm1047 = vcmp.eq.s32.totalorder %v1046, 0
  %vm1048 = vcmp.eq.s32.totalorder %v65, 0
  %vm1049 = vmand %vm1047, %vm1048
  %v1050 = vstv %s1034
  %v1051 = vsel %vm1049, %v1050, 0.0
  %vm1052 = vcmp.eq.s32.totalorder %v65, 1
  %vm1053 = vmand %vm1047, %vm1052
  %v1054 = vstv %s1044
  %v1055 = vsel %vm1053, %v1054, 0.0
  %v1056 = vadd.f32 %v1051, %v1055
  %1057 = vst [vmem:[%s5] sm:$0xff] %v1056
  // Predicated region
  $region22: #{fsim_loss.3} parent=0 // pred_check
    _
  $region23: #{fsim_loss.3} parent=0 // pred_check_branch
    %1059 = sbr.rel (0) target = $region25
  $region24: #{fsim_loss.3} parent=0 // pred_region
    _
  $region25: #{fsim_loss.3} parent=0 // pred_fallthru
    _
  // Predicated region
  $region26: #{fsim_loss.3} parent=0 // pred_check
    _
  $region27: #{fsim_loss.3} parent=0 // pred_check_branch
    %1061 = sbr.rel (0) target = $region29
  $region28: #{fsim_loss.3} parent=0 // pred_region
    _
  $region29: #{fsim_loss.3} parent=0 // pred_fallthru
    _

</llo_original>
